<compile_context>
chip_gen: v7x
topology: tpu7x:2x2x1
jax: 0.10.0
libtpu: 0.0.40
codegen_flags: <defaults>
</compile_context>

<pallas_src>
import jax
import jax.numpy as jnp
from jax import lax
from jax.experimental import pallas as pl
from jax.experimental.pallas import tpu as pltpu


# --------------------------------------------------------------------------
# Activation
# --------------------------------------------------------------------------

def _mish(x):
    """Mish with one EUP transcendental (exp) + approx reciprocal."""
    e = jnp.exp(jnp.minimum(x, 20.0))
    n = e * (e + 2.0)
    t = n * pl.reciprocal(n + 2.0, approx=True)
    # PyTorch softplus threshold: pass-through for x > 20 (tanh ~ 1 there).
    return x * jnp.where(x > 20.0, 1.0, t)


def _mish_ref(x):
    sp = jnp.where(x > 20.0, x, jnp.log1p(jnp.exp(jnp.minimum(x, 20.0))))
    return x * jnp.tanh(sp)


# --------------------------------------------------------------------------
# Kernels
# --------------------------------------------------------------------------

def _conv1_kernel(x_ref, w_ref, b_ref, o_ref):
    """conv1: 3x3 stride-1 pad-1 (Cin=3 -> 32), BN folded, Mish.

    x_ref: (1, H, W, 3)  w_ref: (27, 32)  b_ref: (1, 32)  o_ref: (1, H, W, 32)
    """
    _, H, W, Cin = x_ref.shape
    x = x_ref[0]                                           # (H, W, Cin)
    # zero-pad in registers (no scratch round trip)
    zr = jnp.zeros((1, W, Cin), jnp.float32)
    xp = jnp.concatenate([zr, x, zr], axis=0)              # (H+2, W, Cin)
    zc = jnp.zeros((H + 2, 1, Cin), jnp.float32)
    xp = jnp.concatenate([zc, xp, zc], axis=1)             # (H+2, W+2, Cin)
    taps = [xp[di:di + H, dj:dj + W, :] for di in range(3) for dj in range(3)]
    im = jnp.concatenate(taps, axis=-1).reshape(H * W, 9 * Cin)   # K = 27
    y = _mish(jnp.dot(im, w_ref[...], preferred_element_type=jnp.float32)
              + b_ref[...])
    o_ref[0] = y.reshape(H, W, -1)


def _tail_kernel(xs_ref, w2_ref, b2_ref, w3_ref, b3_ref, w4_ref, b4_ref,
                 w5_ref, b5_ref, w6_ref, b6_ref, w7_ref, b7_ref,
                 w8_ref, b8_ref, o_ref):
    """conv2..conv8 fused; activations stay VMEM-resident.

    xs_ref: (1, Ho, Wo, 128)  space-to-depth(2) of conv1's output.
    o_ref : (1, Ho, Wo, 64)
    """
    _, Ho, Wo, C4 = xs_ref.shape                           # C4 = 4*32 = 128
    v = xs_ref[0]

    # --- conv2: 3x3 stride-2 == 2x2 stride-1 conv on the s2d input ---------
    # Only a top/left 1-block zero pad is needed; im2col K = 4*128 = 512.
    zr = jnp.zeros((1, Wo, C4), jnp.float32)
    vp = jnp.concatenate([zr, v], axis=0)                  # (Ho+1, Wo, 128)
    zc = jnp.zeros((Ho + 1, 1, C4), jnp.float32)
    vp = jnp.concatenate([zc, vp], axis=1)                 # (Ho+1, Wo+1, 128)
    taps = [vp[ti:ti + Ho, tj:tj + Wo, :] for ti in range(2) for tj in range(2)]
    im2 = jnp.concatenate(taps, axis=-1).reshape(Ho * Wo, 4 * C4)
    x2 = _mish(jnp.dot(im2, w2_ref[...], preferred_element_type=jnp.float32)
               + b2_ref[...])                              # (Ho*Wo, 64)

    # --- 1x1 convs ----------------------------------------------------------
    x3 = _mish(jnp.dot(x2, w3_ref[...], preferred_element_type=jnp.float32)
               + b3_ref[...])
    x4 = _mish(jnp.dot(x2, w4_ref[...], preferred_element_type=jnp.float32)
               + b4_ref[...])
    x5 = _mish(jnp.dot(x4, w5_ref[...], preferred_element_type=jnp.float32)
               + b5_ref[...])                              # (Ho*Wo, 32)

    # --- conv6: 3x3 stride-1 pad-1 via im2col (K = 9*32 = 288) + residual ---
    C5 = x5.shape[-1]
    h5 = x5.reshape(Ho, Wo, C5)
    zr6 = jnp.zeros((1, Wo, C5), jnp.float32)
    hp = jnp.concatenate([zr6, h5, zr6], axis=0)           # (Ho+2, Wo, 32)
    zc6 = jnp.zeros((Ho + 2, 1, C5), jnp.float32)
    hp = jnp.concatenate([zc6, hp, zc6], axis=1)           # (Ho+2, Wo+2, 32)
    taps6 = [hp[di:di + Ho, dj:dj + Wo, :] for di in range(3) for dj in range(3)]
    im6 = jnp.concatenate(taps6, axis=-1).reshape(Ho * Wo, 9 * C5)
    x6 = _mish(jnp.dot(im6, w6_ref[...], preferred_element_type=jnp.float32)
               + b6_ref[...]) + x4

    # --- conv7, channel concat, conv8 ---------------------------------------
    x7 = _mish(jnp.dot(x6, w7_ref[...], preferred_element_type=jnp.float32)
               + b7_ref[...])
    x7c = jnp.concatenate([x7, x3], axis=-1)               # (Ho*Wo, 128)
    x8 = _mish(jnp.dot(x7c, w8_ref[...], preferred_element_type=jnp.float32)
               + b8_ref[...])                              # (Ho*Wo, 64)

    o_ref[0] = x8.reshape(Ho, Wo, -1)


# --------------------------------------------------------------------------
# pallas_call wrappers
# --------------------------------------------------------------------------

_COMPILER_PARAMS = pltpu.CompilerParams(
    dimension_semantics=("parallel",),
    vmem_limit_bytes=32 * 1024 * 1024,
)


def _run_conv1(x, w1_k, b1):
    N, H, W, Cin = x.shape
    Cout = w1_k.shape[1]
    return pl.pallas_call(
        _conv1_kernel,
        out_shape=jax.ShapeDtypeStruct((N, H, W, Cout), jnp.float32),
        grid=(N,),
        in_specs=[
            pl.BlockSpec((1, H, W, Cin), lambda n: (n, 0, 0, 0)),
            pl.BlockSpec(w1_k.shape, lambda n: (0, 0)),
            pl.BlockSpec(b1.shape, lambda n: (0, 0)),
        ],
        out_specs=pl.BlockSpec((1, H, W, Cout), lambda n: (n, 0, 0, 0)),
        compiler_params=_COMPILER_PARAMS,
    )(x, w1_k, b1)


def _run_tail(xs, tail_weights):
    N, Ho, Wo, C4 = xs.shape
    Cout = tail_weights[-1][0].shape[1]
    in_specs = [pl.BlockSpec((1, Ho, Wo, C4), lambda n: (n, 0, 0, 0))]
    args = [xs]
    for w, b in tail_weights:
        in_specs.append(pl.BlockSpec(w.shape, lambda n: (0, 0)))
        in_specs.append(pl.BlockSpec(b.shape, lambda n: (0, 0)))
        args.append(w)
        args.append(b)
    return pl.pallas_call(
        _tail_kernel,
        out_shape=jax.ShapeDtypeStruct((N, Ho, Wo, Cout), jnp.float32),
        grid=(N,),
        in_specs=in_specs,
        out_specs=pl.BlockSpec((1, Ho, Wo, Cout), lambda n: (n, 0, 0, 0)),
        compiler_params=_COMPILER_PARAMS,
    )(*args)


# --------------------------------------------------------------------------
# Weight layout helpers
# --------------------------------------------------------------------------

def _fold_bn(w_oihw, gamma, beta, mean, var, eps=1e-5):
    scale = gamma / jnp.sqrt(var + eps)
    return w_oihw * scale[:, None, None, None], beta - mean * scale


def _w1x1_k(wf):                      # (O, I, 1, 1) -> (I, O)
    return jnp.transpose(wf[:, :, 0, 0], (1, 0))


def _w3x3_k(wf):                      # (O, I, 3, 3) -> (9*I, O), K order (di, dj, ci)
    return jnp.transpose(wf, (2, 3, 1, 0)).reshape(-1, wf.shape[0])


def _w2_s2d_k(w2f):
    """3x3 stride-2 weights (OIHW) -> (16*Cin, Cout) for the equivalent
    2x2 stride-1 conv on space-to-depth input.  K order: (ti, tj, pr, pc, ci)."""
    cout, cin, _, _ = w2f.shape
    tap = {(0, 1): 0, (1, 0): 1, (1, 1): 2}   # (block tap, parity) -> kernel idx
    rows = []
    for ti in range(2):
        for tj in range(2):
            for pr in range(2):
                for pc in range(2):
                    di = tap.get((ti, pr))
                    dj = tap.get((tj, pc))
                    if di is None or dj is None:
                        rows.append(jnp.zeros((cin, cout), jnp.float32))
                    else:
                        rows.append(jnp.transpose(w2f[:, :, di, dj], (1, 0)))
    return jnp.concatenate(rows, axis=0)      # (512, 64)


# --------------------------------------------------------------------------
# Full forward (Pallas) and reference
# --------------------------------------------------------------------------

def downsample1_pallas(x_nchw, folded):
    x = jnp.transpose(x_nchw, (0, 2, 3, 1)).astype(jnp.float32)   # NCHW -> NHWC
    N, H, W, _ = x.shape
    assert H % 2 == 0 and W % 2 == 0

    w1_k = _w3x3_k(folded["w1"][0])
    b1_k = folded["w1"][1].reshape(1, -1)

    tail_weights = [
        (_w2_s2d_k(folded["w2"][0]), folded["w2"][1].reshape(1, -1)),
        (_w1x1_k(folded["w3"][0]), folded["w3"][1].reshape(1, -1)),
        (_w1x1_k(folded["w4"][0]), folded["w4"][1].reshape(1, -1)),
        (_w1x1_k(folded["w5"][0]), folded["w5"][1].reshape(1, -1)),
        (_w3x3_k(folded["w6"][0]), folded["w6"][1].reshape(1, -1)),
        (_w1x1_k(folded["w7"][0]), folded["w7"][1].reshape(1, -1)),
        (_w1x1_k(folded["w8"][0]), folded["w8"][1].reshape(1, -1)),
    ]

    # conv1 kernel (full resolution)
    x1 = _run_conv1(x, w1_k, b1_k)                                # (N, H, W, 32)

    # space-to-depth (pure layout plumbing in the wrapper): channel order
    # (row-parity, col-parity, channel) -> 128 lanes.
    C1 = x1.shape[-1]
    Ho, Wo = H // 2, W // 2
    x1s = (x1.reshape(N, Ho, 2, Wo, 2, C1)
              .transpose(0, 1, 3, 2, 4, 5)
              .reshape(N, Ho, Wo, 4 * C1))

    out = _run_tail(x1s, tail_weights)                            # (N, Ho, Wo, 64)
    return jnp.transpose(out, (0, 3, 1, 2))                       # NHWC -> NCHW


def _cba_ref(x, wf, bf, stride, pad):
    dn = ("NCHW", "OIHW", "NCHW")
    y = lax.conv_general_dilated(x, wf, (stride, stride),
                                 [(pad, pad), (pad, pad)],
                                 dimension_numbers=dn)
    return _mish_ref(y + bf[None, :, None, None])


def downsample1_ref(x, folded):
    x1 = _cba_ref(x, *folded["w1"], 1, 1)
    x2 = _cba_ref(x1, *folded["w2"], 2, 1)
    x3 = _cba_ref(x2, *folded["w3"], 1, 0)
    x4 = _cba_ref(x2, *folded["w4"], 1, 0)
    x5 = _cba_ref(x4, *folded["w5"], 1, 0)
    x6 = _cba_ref(x5, *folded["w6"], 1, 1) + x4
    x7 = _cba_ref(x6, *folded["w7"], 1, 0)
    x7 = jnp.concatenate([x7, x3], axis=1)
    return _cba_ref(x7, *folded["w8"], 1, 0)


# --------------------------------------------------------------------------
# Deterministic parameter construction
# --------------------------------------------------------------------------

_LAYERS = [
    ("w1", 3, 32, 3), ("w2", 32, 64, 3), ("w3", 64, 64, 1), ("w4", 64, 64, 1),
    ("w5", 64, 32, 1), ("w6", 32, 64, 3), ("w7", 64, 64, 1), ("w8", 128, 64, 1),
]


def make_params(key):
    folded = {}
    for idx, (name, cin, cout, k) in enumerate(_LAYERS):
        ks = jax.random.split(jax.random.fold_in(key, idx), 5)
        scale = 1.0 / (cin * k * k) ** 0.5
        w = scale * jax.random.normal(ks[0], (cout, cin, k, k), jnp.float32)
        g = 1.0 + 0.1 * jax.random.normal(ks[1], (cout,), jnp.float32)
        b = 0.1 * jax.random.normal(ks[2], (cout,), jnp.float32)
        m = 0.1 * jax.random.normal(ks[3], (cout,), jnp.float32)
        v = jnp.abs(jax.random.normal(ks[4], (cout,), jnp.float32)) + 0.5
        folded[name] = _fold_bn(w, g, b, m, v)
    return folded


# --------------------------------------------------------------------------

if __name__ == "__main__":
    key = jax.random.PRNGKey(0)
    N, C, H, W = 2, 3, 16, 16

    x = jax.random.normal(jax.random.fold_in(key, 999), (N, C, H, W), jnp.float32)
    folded = make_params(key)

    out = jax.block_until_ready(downsample1_pallas(x, folded))
    ref = downsample1_ref(x, folded)

    assert out.shape == ref.shape == (N, 64, H // 2, W // 2)
    max_err = float(jnp.max(jnp.abs(out - ref)))
    # Tolerance loosened slightly to cover the approx-reciprocal in fused Mish.
    assert jnp.allclose(out, ref, atol=2e-2, rtol=2e-2), f"max_err={max_err}"
    print("KERNEL_OK")
</pallas_src>

<mosaic_0001>
module attributes {stable_mosaic.version = 11 : i64} {
  func.func @_conv1_kernel(%arg0: i32, %arg1: memref<1x16x16x3xf32, #tpu.memory_space<vmem>>, %arg2: memref<27x32xf32, #tpu.memory_space<vmem>>, %arg3: memref<1x32xf32, #tpu.memory_space<vmem>>, %arg4: memref<1x16x16x32xf32, #tpu.memory_space<vmem>>) attributes {dimension_semantics = [#tpu.dimension_semantics<parallel>], iteration_bounds = array<i64: 2>, scalar_prefetch = 0 : i64, scratch_operands = 0 : i64, tpu.core_type = #tpu.core_type<tc>, window_params = [{transform_indices = @transform_0, window_bounds = array<i64: 1, 16, 16, 3>}, {pipeline_mode = #tpu.pipeline_mode<synchronous>, transform_indices = @transform_1, window_bounds = array<i64: 27, 32>}, {pipeline_mode = #tpu.pipeline_mode<synchronous>, transform_indices = @transform_2, window_bounds = array<i64: 1, 32>}, {transform_indices = @transform_3, window_bounds = array<i64: 1, 16, 16, 32>}]} {
    %c0 = arith.constant 0 : index
    %c0_0 = arith.constant 0 : index
    %c0_1 = arith.constant 0 : index
    %c0_2 = arith.constant 0 : index
    %0 = vector.load %arg1[%c0, %c0_0, %c0_1, %c0_2] : memref<1x16x16x3xf32, #tpu.memory_space<vmem>>, vector<1x16x16x3xf32>
    %1 = vector.shape_cast %0 : vector<1x16x16x3xf32> to vector<16x16x3xf32>
    %cst = arith.constant 0.000000e+00 : f32
    %2 = vector.broadcast %cst : f32 to vector<1x16x3xf32>
    %3 = tpu.concatenate %2, %1, %2 in 0 : vector<1x16x3xf32>, vector<16x16x3xf32>, vector<1x16x3xf32> -> vector<18x16x3xf32>
    %cst_3 = arith.constant 0.000000e+00 : f32
    %4 = vector.broadcast %cst_3 : f32 to vector<18x1x3xf32>
    %5 = tpu.concatenate %4, %3, %4 in 1 : vector<18x1x3xf32>, vector<18x16x3xf32>, vector<18x1x3xf32> -> vector<18x18x3xf32>
    %6 = vector.extract_strided_slice %5 {offsets = [0, 0, 0], sizes = [16, 16, 3], strides = [1, 1, 1]} : vector<18x18x3xf32> to vector<16x16x3xf32>
    %7 = vector.extract_strided_slice %5 {offsets = [0, 1, 0], sizes = [16, 16, 3], strides = [1, 1, 1]} : vector<18x18x3xf32> to vector<16x16x3xf32>
    %8 = vector.extract_strided_slice %5 {offsets = [0, 2, 0], sizes = [16, 16, 3], strides = [1, 1, 1]} : vector<18x18x3xf32> to vector<16x16x3xf32>
    %9 = vector.extract_strided_slice %5 {offsets = [1, 0, 0], sizes = [16, 16, 3], strides = [1, 1, 1]} : vector<18x18x3xf32> to vector<16x16x3xf32>
    %10 = vector.extract_strided_slice %5 {offsets = [1, 1, 0], sizes = [16, 16, 3], strides = [1, 1, 1]} : vector<18x18x3xf32> to vector<16x16x3xf32>
    %11 = vector.extract_strided_slice %5 {offsets = [1, 2, 0], sizes = [16, 16, 3], strides = [1, 1, 1]} : vector<18x18x3xf32> to vector<16x16x3xf32>
    %12 = vector.extract_strided_slice %5 {offsets = [2, 0, 0], sizes = [16, 16, 3], strides = [1, 1, 1]} : vector<18x18x3xf32> to vector<16x16x3xf32>
    %13 = vector.extract_strided_slice %5 {offsets = [2, 1, 0], sizes = [16, 16, 3], strides = [1, 1, 1]} : vector<18x18x3xf32> to vector<16x16x3xf32>
    %14 = vector.extract_strided_slice %5 {offsets = [2, 2, 0], sizes = [16, 16, 3], strides = [1, 1, 1]} : vector<18x18x3xf32> to vector<16x16x3xf32>
    %15 = tpu.concatenate %6, %7, %8, %9, %10, %11, %12, %13, %14 in 2 : vector<16x16x3xf32>, vector<16x16x3xf32>, vector<16x16x3xf32>, vector<16x16x3xf32>, vector<16x16x3xf32>, vector<16x16x3xf32>, vector<16x16x3xf32>, vector<16x16x3xf32>, vector<16x16x3xf32> -> vector<16x16x27xf32>
    %16 = vector.shape_cast %15 : vector<16x16x27xf32> to vector<256x27xf32>
    %c0_4 = arith.constant 0 : index
    %c0_5 = arith.constant 0 : index
    %17 = vector.load %arg2[%c0_4, %c0_5] : memref<27x32xf32, #tpu.memory_space<vmem>>, vector<27x32xf32>
    %cst_6 = arith.constant dense<0.000000e+00> : vector<256x32xf32>
    %18 = tpu.matmul %16, %17, %cst_6 {dimension_numbers = #tpu.dot_dimension_numbers<[1], [0], [0], [1], [0, 0, 1, 1], [], []>} : vector<256x27xf32>, vector<27x32xf32>, vector<256x32xf32> -> vector<256x32xf32>
    %c0_7 = arith.constant 0 : index
    %c0_8 = arith.constant 0 : index
    %19 = vector.load %arg3[%c0_7, %c0_8] : memref<1x32xf32, #tpu.memory_space<vmem>>, vector<1x32xf32>
    %20 = vector.broadcast %19 : vector<1x32xf32> to vector<256x32xf32>
    %21 = arith.addf %18, %20 : vector<256x32xf32>
    %cst_9 = arith.constant 2.000000e+01 : f32
    %22 = vector.broadcast %cst_9 : f32 to vector<256x32xf32>
    %23 = arith.minimumf %21, %22 : vector<256x32xf32>
    %24 = math.exp %23 : vector<256x32xf32>
    %cst_10 = arith.constant 2.000000e+00 : f32
    %25 = vector.broadcast %cst_10 : f32 to vector<256x32xf32>
    %26 = arith.addf %24, %25 : vector<256x32xf32>
    %27 = arith.mulf %24, %26 : vector<256x32xf32>
    %cst_11 = arith.constant 2.000000e+00 : f32
    %28 = vector.broadcast %cst_11 : f32 to vector<256x32xf32>
    %29 = arith.addf %27, %28 : vector<256x32xf32>
    %30 = tpu.reciprocal %29 {approx = true} : vector<256x32xf32> -> vector<256x32xf32>
    %31 = arith.mulf %27, %30 : vector<256x32xf32>
    %cst_12 = arith.constant 2.000000e+01 : f32
    %32 = vector.broadcast %cst_12 : f32 to vector<256x32xf32>
    %33 = arith.cmpf ogt, %21, %32 : vector<256x32xf32>
    %cst_13 = arith.constant 1.000000e+00 : f32
    %34 = vector.broadcast %cst_13 : f32 to vector<256x32xf32>
    %35 = arith.select %33, %34, %31 : vector<256x32xi1>, vector<256x32xf32>
    %36 = arith.mulf %21, %35 : vector<256x32xf32>
    %37 = vector.shape_cast %36 : vector<256x32xf32> to vector<16x16x32xf32>
    %c0_14 = arith.constant 0 : index
    %c0_15 = arith.constant 0 : index
    %c0_16 = arith.constant 0 : index
    %c0_17 = arith.constant 0 : index
    %38 = vector.load %arg4[%c0_14, %c0_15, %c0_16, %c0_17] : memref<1x16x16x32xf32, #tpu.memory_space<vmem>>, vector<1x16x16x32xf32>
    %39 = vector.shape_cast %38 : vector<1x16x16x32xf32> to vector<16x16x32xf32>
    %40 = vector.shape_cast %37 : vector<16x16x32xf32> to vector<1x16x16x32xf32>
    tpu.vector_store %arg4[%c0_14, %c0_15, %c0_16, %c0_17], %40 {strides = array<i32>} : memref<1x16x16x32xf32, #tpu.memory_space<vmem>>, vector<1x16x16x32xf32>,
    return
  }
  func.func @transform_0(%arg0: i32) -> (i32, i32, i32, i32) {
    %c0_i32 = arith.constant 0 : i32
    %c0_i32_0 = arith.constant 0 : i32
    %c0_i32_1 = arith.constant 0 : i32
    %c0_i32_2 = arith.constant 0 : i32
    return %arg0, %c0_i32, %c0_i32_0, %c0_i32_1 : i32, i32, i32, i32
  }
  func.func @transform_1(%arg0: i32) -> (i32, i32) {
    %c0_i32 = arith.constant 0 : i32
    %c0_i32_0 = arith.constant 0 : i32
    %c0_i32_1 = arith.constant 0 : i32
    return %c0_i32, %c0_i32_0 : i32, i32
  }
  func.func @transform_2(%arg0: i32) -> (i32, i32) {
    %c0_i32 = arith.constant 0 : i32
    %c0_i32_0 = arith.constant 0 : i32
    %c0_i32_1 = arith.constant 0 : i32
    return %c0_i32, %c0_i32_0 : i32, i32
  }
  func.func @transform_3(%arg0: i32) -> (i32, i32, i32, i32) {
    %c0_i32 = arith.constant 0 : i32
    %c0_i32_0 = arith.constant 0 : i32
    %c0_i32_1 = arith.constant 0 : i32
    %c0_i32_2 = arith.constant 0 : i32
    return %arg0, %c0_i32, %c0_i32_0, %c0_i32_1 : i32, i32, i32, i32
  }
}

</mosaic_0001>

<llo_original>
// kernel: tpu_custom_call.1
$region0: #{tpu_custom_call.1}
  #allocation0 [shape = 'u32[]', space=smem, size = 0x4, offset = 0x4, fixed_abs, tag = 'smem constant byte address 0x4 - core index']
  #allocation1 [shape = 'u32[144,128]{1,0:T(1,128)}', space=vmem, size = 0x12000, scoped, tag = 'internal scratch']
  %s0 = inlined_call_operand.vmem [shape: f32[2,16,16,3], index: 0, kind: input, shape index: {}]
  %s1 = inlined_call_operand.vmem [shape: f32[27,32], index: 1, kind: input, shape index: {}]
  %s2 = inlined_call_operand.vmem [shape: f32[1,32], index: 2, kind: input, shape index: {}]
  %s3 = inlined_call_operand.hbm [shape: f32[2,16,16,32], index: 3, kind: output, shape index: {}]
  %s4 = sld [smem:[#allocation0]]
  $region45: #{tpu_custom_call.1} parent=0
    _
  %s6 = ssub.s32 1, %s4
  %s7 = scalar_select 0, %s6, %s4
  $region1: #{tpu_custom_call.1} parent=0
    #allocation2 [shape = 'u8[262144]{0}', space=vmem, size = 0x40000, scoped, tag = 'output window, operand 0']
    #allocation3 [shape = 's32[2]{0}', space=sflag, size = 0x8, scoped, tag = 'scoped memory for tpu_custom_call.1']
    %8 = vsyncpa [#allocation3], 0
    %s9 = scalar_lea.sflag [#allocation3], 1
    %10 = vsyncpa %s9, 0
    loop: start=0, step=1, limit=4
    $region2: #{tpu_custom_call.1} parent=1 // loop_pre_header
      _
    $region3: #{tpu_custom_call.1} parent=1 // loop_header
      %s12 = sphi 0, %s16
      %p13 = scmp.ge.s32.totalorder %s12, 4
      %s22 = sphi 0, %s24
      %s25 = sphi 0, %s22
      %s26 = sphi 0, %s25
      %s42 = sphi 0, %s26
      %s46 = sphi 0, %s46
      %s48 = sphi 0, %s46
      %s49 = sphi 0, %s48
      %s63 = sphi 0, %s49
      %s67 = sphi 0, %s67
      %s69 = sphi 0, %s67
      %s70 = sphi 0, %s69
      %s84 = sphi 0, %s70
      %s90 = sphi 0, %s92
      %s93 = sphi 0, %s90
      %s94 = sphi 0, %s93
      %s110 = sphi 0, %s94
    $region4: #{tpu_custom_call.1} parent=1 // loop_header_branch
      %15 = sbr.rel (%p13) target = $region8
    $region5: #{tpu_custom_call.1} parent=1 // loop_body
      %s17 = ssub.s32 %s12, 1
      %s18 = ssub.s32 %s12, 2
      %s19 = sadd.s32 %s12, 1
      %s20 = ssub.s32 %s12, %s19
      %p21 = scmp.eq.s32.totalorder %s20, 0
      %s23 = sadd.s32 %s22, 1
      %s24 = scalar_select %p21, %s22, %s23
      %p27 = pneg %p21
      %p28 = scmp.eq.s32.totalorder %s12, 1
      %p29 = por %p27, %p28
      %p30 = scmp.ne.s32.totalorder %s22, %s25
      %p31 = scmp.eq.s32.totalorder %s12, 0
      %p32 = por %p30, %p31
      %p33 = scmp.ne.s32.totalorder %s22, %s25
      %p34 = scmp.eq.s32.totalorder %s17, 1
      %p35 = por %p33, %p34
      %p36 = scmp.ne.s32.totalorder %s25, %s26
      %p37 = scmp.eq.s32.totalorder %s17, 0
      %p38 = por %p36, %p37
      %p39 = scmp.ne.s32.totalorder %s25, %s26
      %p40 = scmp.eq.s32.totalorder %s18, 1
      %p41 = por %p39, %p40
      %p43 = scmp.ne.s32.totalorder %s26, %s42
      %p44 = scmp.eq.s32.totalorder %s18, 0
      %p45 = por %p43, %p44
      %s47 = sadd.s32 %s46, 1
      %p50 = scmp.eq.s32.totalorder %s12, 1
      %p51 = scmp.ne.s32.totalorder %s46, %s48
      %p52 = scmp.eq.s32.totalorder %s12, 0
      %p53 = por %p51, %p52
      %p54 = scmp.ne.s32.totalorder %s46, %s48
      %p55 = scmp.eq.s32.totalorder %s17, 1
      %p56 = por %p54, %p55
      %p57 = scmp.ne.s32.totalorder %s48, %s49
      %p58 = scmp.eq.s32.totalorder %s17, 0
      %p59 = por %p57, %p58
      %p60 = scmp.ne.s32.totalorder %s48, %s49
      %p61 = scmp.eq.s32.totalorder %s18, 1
      %p62 = por %p60, %p61
      %p64 = scmp.ne.s32.totalorder %s49, %s63
      %p65 = scmp.eq.s32.totalorder %s18, 0
      %p66 = por %p64, %p65
      %s68 = sadd.s32 %s67, 1
      %p71 = scmp.eq.s32.totalorder %s12, 1
      %p72 = scmp.ne.s32.totalorder %s67, %s69
      %p73 = scmp.eq.s32.totalorder %s12, 0
      %p74 = por %p72, %p73
      %p75 = scmp.ne.s32.totalorder %s67, %s69
      %p76 = scmp.eq.s32.totalorder %s17, 1
      %p77 = por %p75, %p76
      %p78 = scmp.ne.s32.totalorder %s69, %s70
      %p79 = scmp.eq.s32.totalorder %s17, 0
      %p80 = por %p78, %p79
      %p81 = scmp.ne.s32.totalorder %s69, %s70
      %p82 = scmp.eq.s32.totalorder %s18, 1
      %p83 = por %p81, %p82
      %p85 = scmp.ne.s32.totalorder %s70, %s84
      %p86 = scmp.eq.s32.totalorder %s18, 0
      %p87 = por %p85, %p86
      %s88 = ssub.s32 %s12, %s19
      %p89 = scmp.eq.s32.totalorder %s88, 0
      %s91 = sadd.s32 %s90, 1
      %s92 = scalar_select %p89, %s90, %s91
      %p95 = pneg %p89
      %p96 = scmp.eq.s32.totalorder %s12, 1
      %p97 = por %p95, %p96
      %p98 = scmp.ne.s32.totalorder %s90, %s93
      %p99 = scmp.eq.s32.totalorder %s12, 0
      %p100 = por %p98, %p99
      %p101 = scmp.ne.s32.totalorder %s90, %s93
      %p102 = scmp.eq.s32.totalorder %s17, 1
      %p103 = por %p101, %p102
      %p104 = scmp.ne.s32.totalorder %s93, %s94
      %p105 = scmp.eq.s32.totalorder %s17, 0
      %p106 = por %p104, %p105
      %p107 = scmp.ne.s32.totalorder %s93, %s94
      %p108 = scmp.eq.s32.totalorder %s18, 1
      %p109 = por %p107, %p108
      %p111 = scmp.ne.s32.totalorder %s94, %s110
      %p112 = scmp.eq.s32.totalorder %s18, 0
      %p113 = por %p111, %p112
      %p114 = scmp.le.s32.totalorder 1, %s12
      %p115 = scmp.lt.s32.totalorder %s12, 3
      %p116 = pnand %p114, %p115
      %p117 = pneg %p116
      // Predicated region
      $region9: #{tpu_custom_call.1} parent=5 // pred_check
        _
      $region10: #{tpu_custom_call.1} parent=5 // pred_check_branch
        %119 = sbr.rel (%p116) target = $region12
      $region11: #{tpu_custom_call.1} parent=5 // pred_region
        %s120 = ssub.s32 %s12, 1
        // Predicated region
        $region13: #{tpu_custom_call.1} parent=11 // pred_check
          %p121 = pneg %p59
        $region14: #{tpu_custom_call.1} parent=11 // pred_check_branch
          %123 = sbr.rel (%p121) target = $region16
        $region15: #{tpu_custom_call.1} parent=11 // pred_region
          _
        $region16: #{tpu_custom_call.1} parent=11 // pred_fallthru
          _
        // Predicated region
        $region17: #{tpu_custom_call.1} parent=11 // pred_check
          %p124 = pneg %p80
        $region18: #{tpu_custom_call.1} parent=11 // pred_check_branch
          %126 = sbr.rel (%p124) target = $region20
        $region19: #{tpu_custom_call.1} parent=11 // pred_region
          _
        $region20: #{tpu_custom_call.1} parent=11 // pred_fallthru
          _
      $region12: #{tpu_custom_call.1} parent=5 // pred_fallthru
        _
      %p127 = scmp.lt.s32.totalorder %s12, 2
      // Predicated region
      $region21: #{tpu_custom_call.1} parent=5 // pred_check
        %p128 = pneg %p127
      $region22: #{tpu_custom_call.1} parent=5 // pred_check_branch
        %130 = sbr.rel (%p128) target = $region24
      $region23: #{tpu_custom_call.1} parent=5 // pred_region
        // Predicated region
        $region25: #{tpu_custom_call.1} parent=23 // pred_check
          %p131 = pneg %p32
        $region26: #{tpu_custom_call.1} parent=23 // pred_check_branch
          %133 = sbr.rel (%p131) target = $region28
        $region27: #{tpu_custom_call.1} parent=23 // pred_region
          %p134 = scmp.lt.s32.totalorder %s12, 1
          %s135 = scalar_select %p134, %s12, 1
          %s136 = smul.addr %s135, 32
          %s137 = smul.addr %s136, 8
          %s138 = scalar_lea.vmem %s0, %s137
        $region28: #{tpu_custom_call.1} parent=23 // pred_fallthru
          _
      $region24: #{tpu_custom_call.1} parent=5 // pred_fallthru
        _
      %p139 = scmp.le.s32.totalorder 1, %s12
      %p140 = scmp.lt.s32.totalorder %s12, 3
      %p141 = pnand %p139, %p140
      %p142 = pneg %p141
      // Predicated region
      $region29: #{tpu_custom_call.1} parent=5 // pred_check
        _
      $region30: #{tpu_custom_call.1} parent=5 // pred_check_branch
        %144 = sbr.rel (%p141) target = $region32
      $region31: #{tpu_custom_call.1} parent=5 // pred_region
        %s145 = ssub.s32 %s12, 1
        %p146 = scmp.lt.s32.totalorder %s17, 1
        %s147 = scalar_select %p146, %s17, 1
        %s148 = smul.addr %s147, 32
        %s149 = smul.addr %s148, 8
        %s150 = scalar_lea.vmem %s0, %s149
        %p151 = pneg %p38
        %p152 = pneg %p35
        %p153 = pneg %p59
        %p154 = pneg %p56
        %p155 = pneg %p80
        %p156 = pneg %p77
        %p157 = pneg %p106
        %p158 = pneg %p103
        %s159 = sand.u32 %s93, 1
        %s160 = scalar_lea.sflag [#allocation3], %s159
        %s161 = sand.u32 %s93, 1
        %s162 = smul.addr %s161, 256
        %s163 = scalar_lea.vmem [#allocation2], %s162
        %p164 = scmp.lt.s32.totalorder %s17, 1
        %s165 = scalar_select %p164, %s17, 1
        %s166 = smul.addr %s165, 32
        %s167 = smul.addr %s166, 8
        %s168 = scalar_lea.vmem %s0, %s167
        %v169 = vld [vmem:[%s168] sm:$0xff]
        %v170 = vld [vmem:[%s168 + $0x8] sm:$0xff]
        %v171 = vld [vmem:[%s168 + $0x10] sm:$0xff]
        %v172 = vld [vmem:[%s168 + $0x18] sm:$0xff]
        %v173 = vld [vmem:[%s168 + $0x20] sm:$0xff]
        %v174 = vld [vmem:[%s168 + $0x28] sm:$0xff]
        %v175 = vld [vmem:[%s168 + $0x30] sm:$0xff]
        %v176 = vld [vmem:[%s168 + $0x38] sm:$0xff]
        %v177 = vld [vmem:[%s168 + $0x40] sm:$0xff]
        %v178 = vld [vmem:[%s168 + $0x48] sm:$0xff]
        %v179 = vld [vmem:[%s168 + $0x50] sm:$0xff]
        %v180 = vld [vmem:[%s168 + $0x58] sm:$0xff]
        %v181 = vld [vmem:[%s168 + $0x60] sm:$0xff]
        %v182 = vld [vmem:[%s168 + $0x68] sm:$0xff]
        %v183 = vld [vmem:[%s168 + $0x70] sm:$0xff]
        %v184 = vld [vmem:[%s168 + $0x78] sm:$0xff]
        %v185 = vld [vmem:[%s168 + $0x80] sm:$0xff]
        %v186 = vld [vmem:[%s168 + $0x88] sm:$0xff]
        %v187 = vld [vmem:[%s168 + $0x90] sm:$0xff]
        %v188 = vld [vmem:[%s168 + $0x98] sm:$0xff]
        %v189 = vld [vmem:[%s168 + $0xa0] sm:$0xff]
        %v190 = vld [vmem:[%s168 + $0xa8] sm:$0xff]
        %v191 = vld [vmem:[%s168 + $0xb0] sm:$0xff]
        %v192 = vld [vmem:[%s168 + $0xb8] sm:$0xff]
        %v193 = vld [vmem:[%s168 + $0xc0] sm:$0xff]
        %v194 = vld [vmem:[%s168 + $0xc8] sm:$0xff]
        %v195 = vld [vmem:[%s168 + $0xd0] sm:$0xff]
        %v196 = vld [vmem:[%s168 + $0xd8] sm:$0xff]
        %v197 = vld [vmem:[%s168 + $0xe0] sm:$0xff]
        %v198 = vld [vmem:[%s168 + $0xe8] sm:$0xff]
        %v199 = vld [vmem:[%s168 + $0xf0] sm:$0xff]
        %v200 = vld [vmem:[%s168 + $0xf8] sm:$0xff]
        %vm234 = vcmask 1040384
        %v235 = vrot.slane 0.0, 7
        %v236 = vsel %vm234, %v235, %v235
        %v237 = vrot.slane %v169, 7
        %v238 = vrot.slane %v170, 7
        %v239 = vsel %vm234, %v237, %v238
        %v240 = vrot.slane %v171, 7
        %v241 = vrot.slane %v172, 7
        %v242 = vsel %vm234, %v240, %v241
        %v243 = vrot.slane %v173, 7
        %v244 = vrot.slane %v174, 7
        %v245 = vsel %vm234, %v243, %v244
        %v246 = vrot.slane %v175, 7
        %v247 = vrot.slane %v176, 7
        %v248 = vsel %vm234, %v246, %v247
        %v249 = vrot.slane %v177, 7
        %v250 = vrot.slane %v178, 7
        %v251 = vsel %vm234, %v249, %v250
        %v252 = vrot.slane %v179, 7
        %v253 = vrot.slane %v180, 7
        %v254 = vsel %vm234, %v252, %v253
        %v255 = vrot.slane %v181, 7
        %v256 = vrot.slane %v182, 7
        %v257 = vsel %vm234, %v255, %v256
        %v258 = vrot.slane %v183, 7
        %v259 = vrot.slane %v184, 7
        %v260 = vsel %vm234, %v258, %v259
        %v261 = vrot.slane %v185, 7
        %v262 = vrot.slane %v186, 7
        %v263 = vsel %vm234, %v261, %v262
        %v264 = vrot.slane %v187, 7
        %v265 = vrot.slane %v188, 7
        %v266 = vsel %vm234, %v264, %v265
        %v267 = vrot.slane %v189, 7
        %v268 = vrot.slane %v190, 7
        %v269 = vsel %vm234, %v267, %v268
        %v270 = vrot.slane %v191, 7
        %v271 = vrot.slane %v192, 7
        %v272 = vsel %vm234, %v270, %v271
        %v273 = vrot.slane %v193, 7
        %v274 = vrot.slane %v194, 7
        %v275 = vsel %vm234, %v273, %v274
        %v276 = vrot.slane %v195, 7
        %v277 = vrot.slane %v196, 7
        %v278 = vsel %vm234, %v276, %v277
        %v279 = vrot.slane %v197, 7
        %v280 = vrot.slane %v198, 7
        %v281 = vsel %vm234, %v279, %v280
        %v282 = vrot.slane %v199, 7
        %v283 = vrot.slane %v200, 7
        %v284 = vsel %vm234, %v282, %v283
        %v334 = vsel %vm234, 0.0, %v235
        %v335 = vsel %vm234, 0.0, %v237
        %v336 = vsel %vm234, 0.0, %v240
        %v337 = vsel %vm234, 0.0, %v243
        %v338 = vsel %vm234, 0.0, %v246
        %v339 = vsel %vm234, 0.0, %v249
        %v340 = vsel %vm234, 0.0, %v252
        %v341 = vsel %vm234, 0.0, %v255
        %v342 = vsel %vm234, 0.0, %v258
        %v343 = vsel %vm234, 0.0, %v261
        %v344 = vsel %vm234, 0.0, %v264
        %v345 = vsel %vm234, 0.0, %v267
        %v346 = vsel %vm234, 0.0, %v270
        %v347 = vsel %vm234, 0.0, %v273
        %v348 = vsel %vm234, 0.0, %v276
        %v349 = vsel %vm234, 0.0, %v279
        %v350 = vsel %vm234, 0.0, %v282
        %v351 = vsel %vm234, %v235, 0.0
        %v352 = vsel %vm234, %v238, 0.0
        %v353 = vsel %vm234, %v241, 0.0
        %v354 = vsel %vm234, %v244, 0.0
        %v355 = vsel %vm234, %v247, 0.0
        %v356 = vsel %vm234, %v250, 0.0
        %v357 = vsel %vm234, %v253, 0.0
        %v358 = vsel %vm234, %v256, 0.0
        %v359 = vsel %vm234, %v259, 0.0
        %v360 = vsel %vm234, %v262, 0.0
        %v361 = vsel %vm234, %v265, 0.0
        %v362 = vsel %vm234, %v268, 0.0
        %v363 = vsel %vm234, %v271, 0.0
        %v364 = vsel %vm234, %v274, 0.0
        %v365 = vsel %vm234, %v277, 0.0
        %v366 = vsel %vm234, %v280, 0.0
        %v367 = vsel %vm234, %v283, 0.0
        %vm400 = vcmask 1046528
        %v401 = vrot.slane %v334, 1
        %v402 = vrot.slane %v236, 1
        %v403 = vsel %vm400, %v401, %v402
        %v404 = vrot.slane %v351, 1
        %v405 = vsel %vm400, %v402, %v404
        %v406 = vrot.slane %v335, 1
        %v407 = vrot.slane %v239, 1
        %v408 = vsel %vm400, %v406, %v407
        %v409 = vrot.slane %v352, 1
        %v410 = vsel %vm400, %v407, %v409
        %v411 = vrot.slane %v336, 1
        %v412 = vrot.slane %v242, 1
        %v413 = vsel %vm400, %v411, %v412
        %v414 = vrot.slane %v353, 1
        %v415 = vsel %vm400, %v412, %v414
        %v416 = vrot.slane %v337, 1
        %v417 = vrot.slane %v245, 1
        %v418 = vsel %vm400, %v416, %v417
        %v419 = vrot.slane %v354, 1
        %v420 = vsel %vm400, %v417, %v419
        %v421 = vrot.slane %v338, 1
        %v422 = vrot.slane %v248, 1
        %v423 = vsel %vm400, %v421, %v422
        %v424 = vrot.slane %v355, 1
        %v425 = vsel %vm400, %v422, %v424
        %v426 = vrot.slane %v339, 1
        %v427 = vrot.slane %v251, 1
        %v428 = vsel %vm400, %v426, %v427
        %v429 = vrot.slane %v356, 1
        %v430 = vsel %vm400, %v427, %v429
        %v431 = vrot.slane %v340, 1
        %v432 = vrot.slane %v254, 1
        %v433 = vsel %vm400, %v431, %v432
        %v434 = vrot.slane %v357, 1
        %v435 = vsel %vm400, %v432, %v434
        %v436 = vrot.slane %v341, 1
        %v437 = vrot.slane %v257, 1
        %v438 = vsel %vm400, %v436, %v437
        %v439 = vrot.slane %v358, 1
        %v440 = vsel %vm400, %v437, %v439
        %v441 = vrot.slane %v342, 1
        %v442 = vrot.slane %v260, 1
        %v443 = vsel %vm400, %v441, %v442
        %v444 = vrot.slane %v359, 1
        %v445 = vsel %vm400, %v442, %v444
        %v446 = vrot.slane %v343, 1
        %v447 = vrot.slane %v263, 1
        %v448 = vsel %vm400, %v446, %v447
        %v449 = vrot.slane %v360, 1
        %v450 = vsel %vm400, %v447, %v449
        %v451 = vrot.slane %v344, 1
        %v452 = vrot.slane %v266, 1
        %v453 = vsel %vm400, %v451, %v452
        %v454 = vrot.slane %v361, 1
        %v455 = vsel %vm400, %v452, %v454
        %v456 = vrot.slane %v345, 1
        %v457 = vrot.slane %v269, 1
        %v458 = vsel %vm400, %v456, %v457
        %v459 = vrot.slane %v362, 1
        %v460 = vsel %vm400, %v457, %v459
        %v461 = vrot.slane %v346, 1
        %v462 = vrot.slane %v272, 1
        %v463 = vsel %vm400, %v461, %v462
        %v464 = vrot.slane %v363, 1
        %v465 = vsel %vm400, %v462, %v464
        %v466 = vrot.slane %v347, 1
        %v467 = vrot.slane %v275, 1
        %v468 = vsel %vm400, %v466, %v467
        %v469 = vrot.slane %v364, 1
        %v470 = vsel %vm400, %v467, %v469
        %v471 = vrot.slane %v348, 1
        %v472 = vrot.slane %v278, 1
        %v473 = vsel %vm400, %v471, %v472
        %v474 = vrot.slane %v365, 1
        %v475 = vsel %vm400, %v472, %v474
        %v476 = vrot.slane %v349, 1
        %v477 = vrot.slane %v281, 1
        %v478 = vsel %vm400, %v476, %v477
        %v479 = vrot.slane %v366, 1
        %v480 = vsel %vm400, %v477, %v479
        %481 = vrot.lane.b32.xlu0 %v403, 3
        %v482 = vpop.permute.xlu0 %481
        %483 = vrot.lane.b32.xlu0 %v405, 3
        %v484 = vpop.permute.xlu0 %483
        %485 = vrot.lane.b32.xlu0 %v408, 3
        %v486 = vpop.permute.xlu0 %485
        %487 = vrot.lane.b32.xlu0 %v410, 3
        %v488 = vpop.permute.xlu0 %487
        %489 = vrot.lane.b32.xlu0 %v413, 3
        %v490 = vpop.permute.xlu0 %489
        %491 = vrot.lane.b32.xlu0 %v415, 3
        %v492 = vpop.permute.xlu0 %491
        %493 = vrot.lane.b32.xlu0 %v418, 3
        %v494 = vpop.permute.xlu0 %493
        %495 = vrot.lane.b32.xlu0 %v420, 3
        %v496 = vpop.permute.xlu0 %495
        %497 = vrot.lane.b32.xlu0 %v423, 3
        %v498 = vpop.permute.xlu0 %497
        %499 = vrot.lane.b32.xlu0 %v425, 3
        %v500 = vpop.permute.xlu0 %499
        %501 = vrot.lane.b32.xlu0 %v428, 3
        %v502 = vpop.permute.xlu0 %501
        %503 = vrot.lane.b32.xlu0 %v430, 3
        %v504 = vpop.permute.xlu0 %503
        %505 = vrot.lane.b32.xlu0 %v433, 3
        %v506 = vpop.permute.xlu0 %505
        %507 = vrot.lane.b32.xlu0 %v435, 3
        %v508 = vpop.permute.xlu0 %507
        %509 = vrot.lane.b32.xlu0 %v438, 3
        %v510 = vpop.permute.xlu0 %509
        %511 = vrot.lane.b32.xlu0 %v440, 3
        %v512 = vpop.permute.xlu0 %511
        %513 = vrot.lane.b32.xlu0 %v443, 3
        %v514 = vpop.permute.xlu0 %513
        %515 = vrot.lane.b32.xlu0 %v445, 3
        %v516 = vpop.permute.xlu0 %515
        %517 = vrot.lane.b32.xlu0 %v448, 3
        %v518 = vpop.permute.xlu0 %517
        %519 = vrot.lane.b32.xlu0 %v450, 3
        %v520 = vpop.permute.xlu0 %519
        %521 = vrot.lane.b32.xlu0 %v453, 3
        %v522 = vpop.permute.xlu0 %521
        %523 = vrot.lane.b32.xlu0 %v455, 3
        %v524 = vpop.permute.xlu0 %523
        %525 = vrot.lane.b32.xlu0 %v458, 3
        %v526 = vpop.permute.xlu0 %525
        %527 = vrot.lane.b32.xlu0 %v460, 3
        %v528 = vpop.permute.xlu0 %527
        %529 = vrot.lane.b32.xlu0 %v463, 3
        %v530 = vpop.permute.xlu0 %529
        %531 = vrot.lane.b32.xlu0 %v465, 3
        %v532 = vpop.permute.xlu0 %531
        %533 = vrot.lane.b32.xlu0 %v468, 3
        %v534 = vpop.permute.xlu0 %533
        %535 = vrot.lane.b32.xlu0 %v470, 3
        %v536 = vpop.permute.xlu0 %535
        %537 = vrot.lane.b32.xlu0 %v473, 3
        %v538 = vpop.permute.xlu0 %537
        %539 = vrot.lane.b32.xlu0 %v475, 3
        %v540 = vpop.permute.xlu0 %539
        %541 = vrot.lane.b32.xlu0 %v478, 3
        %v542 = vpop.permute.xlu0 %541
        %543 = vrot.lane.b32.xlu0 %v480, 3
        %v544 = vpop.permute.xlu0 %543
        %vm577 = vcmask 1045504
        %v578 = vrot.slane %v334, 2
        %v579 = vrot.slane %v236, 2
        %v580 = vsel %vm577, %v578, %v579
        %v581 = vrot.slane %v351, 2
        %v582 = vsel %vm577, %v579, %v581
        %v583 = vrot.slane %v335, 2
        %v584 = vrot.slane %v239, 2
        %v585 = vsel %vm577, %v583, %v584
        %v586 = vrot.slane %v352, 2
        %v587 = vsel %vm577, %v584, %v586
        %v588 = vrot.slane %v336, 2
        %v589 = vrot.slane %v242, 2
        %v590 = vsel %vm577, %v588, %v589
        %v591 = vrot.slane %v353, 2
        %v592 = vsel %vm577, %v589, %v591
        %v593 = vrot.slane %v337, 2
        %v594 = vrot.slane %v245, 2
        %v595 = vsel %vm577, %v593, %v594
        %v596 = vrot.slane %v354, 2
        %v597 = vsel %vm577, %v594, %v596
        %v598 = vrot.slane %v338, 2
        %v599 = vrot.slane %v248, 2
        %v600 = vsel %vm577, %v598, %v599
        %v601 = vrot.slane %v355, 2
        %v602 = vsel %vm577, %v599, %v601
        %v603 = vrot.slane %v339, 2
        %v604 = vrot.slane %v251, 2
        %v605 = vsel %vm577, %v603, %v604
        %v606 = vrot.slane %v356, 2
        %v607 = vsel %vm577, %v604, %v606
        %v608 = vrot.slane %v340, 2
        %v609 = vrot.slane %v254, 2
        %v610 = vsel %vm577, %v608, %v609
        %v611 = vrot.slane %v357, 2
        %v612 = vsel %vm577, %v609, %v611
        %v613 = vrot.slane %v341, 2
        %v614 = vrot.slane %v257, 2
        %v615 = vsel %vm577, %v613, %v614
        %v616 = vrot.slane %v358, 2
        %v617 = vsel %vm577, %v614, %v616
        %v618 = vrot.slane %v342, 2
        %v619 = vrot.slane %v260, 2
        %v620 = vsel %vm577, %v618, %v619
        %v621 = vrot.slane %v359, 2
        %v622 = vsel %vm577, %v619, %v621
        %v623 = vrot.slane %v343, 2
        %v624 = vrot.slane %v263, 2
        %v625 = vsel %vm577, %v623, %v624
        %v626 = vrot.slane %v360, 2
        %v627 = vsel %vm577, %v624, %v626
        %v628 = vrot.slane %v344, 2
        %v629 = vrot.slane %v266, 2
        %v630 = vsel %vm577, %v628, %v629
        %v631 = vrot.slane %v361, 2
        %v632 = vsel %vm577, %v629, %v631
        %v633 = vrot.slane %v345, 2
        %v634 = vrot.slane %v269, 2
        %v635 = vsel %vm577, %v633, %v634
        %v636 = vrot.slane %v362, 2
        %v637 = vsel %vm577, %v634, %v636
        %v638 = vrot.slane %v346, 2
        %v639 = vrot.slane %v272, 2
        %v640 = vsel %vm577, %v638, %v639
        %v641 = vrot.slane %v363, 2
        %v642 = vsel %vm577, %v639, %v641
        %v643 = vrot.slane %v347, 2
        %v644 = vrot.slane %v275, 2
        %v645 = vsel %vm577, %v643, %v644
        %v646 = vrot.slane %v364, 2
        %v647 = vsel %vm577, %v644, %v646
        %v648 = vrot.slane %v348, 2
        %v649 = vrot.slane %v278, 2
        %v650 = vsel %vm577, %v648, %v649
        %v651 = vrot.slane %v365, 2
        %v652 = vsel %vm577, %v649, %v651
        %v653 = vrot.slane %v349, 2
        %v654 = vrot.slane %v281, 2
        %v655 = vsel %vm577, %v653, %v654
        %v656 = vrot.slane %v366, 2
        %v657 = vsel %vm577, %v654, %v656
        %658 = vrot.lane.b32.xlu0 %v580, 6
        %v659 = vpop.permute.xlu0 %658
        %660 = vrot.lane.b32.xlu0 %v582, 6
        %v661 = vpop.permute.xlu0 %660
        %662 = vrot.lane.b32.xlu0 %v585, 6
        %v663 = vpop.permute.xlu0 %662
        %664 = vrot.lane.b32.xlu0 %v587, 6
        %v665 = vpop.permute.xlu0 %664
        %666 = vrot.lane.b32.xlu0 %v590, 6
        %v667 = vpop.permute.xlu0 %666
        %668 = vrot.lane.b32.xlu0 %v592, 6
        %v669 = vpop.permute.xlu0 %668
        %670 = vrot.lane.b32.xlu0 %v595, 6
        %v671 = vpop.permute.xlu0 %670
        %672 = vrot.lane.b32.xlu0 %v597, 6
        %v673 = vpop.permute.xlu0 %672
        %674 = vrot.lane.b32.xlu0 %v600, 6
        %v675 = vpop.permute.xlu0 %674
        %676 = vrot.lane.b32.xlu0 %v602, 6
        %v677 = vpop.permute.xlu0 %676
        %678 = vrot.lane.b32.xlu0 %v605, 6
        %v679 = vpop.permute.xlu0 %678
        %680 = vrot.lane.b32.xlu0 %v607, 6
        %v681 = vpop.permute.xlu0 %680
        %682 = vrot.lane.b32.xlu0 %v610, 6
        %v683 = vpop.permute.xlu0 %682
        %684 = vrot.lane.b32.xlu0 %v612, 6
        %v685 = vpop.permute.xlu0 %684
        %686 = vrot.lane.b32.xlu0 %v615, 6
        %v687 = vpop.permute.xlu0 %686
        %688 = vrot.lane.b32.xlu0 %v617, 6
        %v689 = vpop.permute.xlu0 %688
        %690 = vrot.lane.b32.xlu0 %v620, 6
        %v691 = vpop.permute.xlu0 %690
        %692 = vrot.lane.b32.xlu0 %v622, 6
        %v693 = vpop.permute.xlu0 %692
        %694 = vrot.lane.b32.xlu0 %v625, 6
        %v695 = vpop.permute.xlu0 %694
        %696 = vrot.lane.b32.xlu0 %v627, 6
        %v697 = vpop.permute.xlu0 %696
        %698 = vrot.lane.b32.xlu0 %v630, 6
        %v699 = vpop.permute.xlu0 %698
        %700 = vrot.lane.b32.xlu0 %v632, 6
        %v701 = vpop.permute.xlu0 %700
        %702 = vrot.lane.b32.xlu0 %v635, 6
        %v703 = vpop.permute.xlu0 %702
        %704 = vrot.lane.b32.xlu0 %v637, 6
        %v705 = vpop.permute.xlu0 %704
        %706 = vrot.lane.b32.xlu0 %v640, 6
        %v707 = vpop.permute.xlu0 %706
        %708 = vrot.lane.b32.xlu0 %v642, 6
        %v709 = vpop.permute.xlu0 %708
        %710 = vrot.lane.b32.xlu0 %v645, 6
        %v711 = vpop.permute.xlu0 %710
        %712 = vrot.lane.b32.xlu0 %v647, 6
        %v713 = vpop.permute.xlu0 %712
        %714 = vrot.lane.b32.xlu0 %v650, 6
        %v715 = vpop.permute.xlu0 %714
        %716 = vrot.lane.b32.xlu0 %v652, 6
        %v717 = vpop.permute.xlu0 %716
        %718 = vrot.lane.b32.xlu0 %v655, 6
        %v719 = vpop.permute.xlu0 %718
        %720 = vrot.lane.b32.xlu0 %v657, 6
        %v721 = vpop.permute.xlu0 %720
        %755 = vrot.lane.b32.xlu0 %v335, 9
        %v756 = vpop.permute.xlu0 %755
        %757 = vrot.lane.b32.xlu0 %v239, 9
        %v758 = vpop.permute.xlu0 %757
        %759 = vrot.lane.b32.xlu0 %v336, 9
        %v760 = vpop.permute.xlu0 %759
        %761 = vrot.lane.b32.xlu0 %v242, 9
        %v762 = vpop.permute.xlu0 %761
        %763 = vrot.lane.b32.xlu0 %v337, 9
        %v764 = vpop.permute.xlu0 %763
        %765 = vrot.lane.b32.xlu0 %v245, 9
        %v766 = vpop.permute.xlu0 %765
        %767 = vrot.lane.b32.xlu0 %v338, 9
        %v768 = vpop.permute.xlu0 %767
        %769 = vrot.lane.b32.xlu0 %v248, 9
        %v770 = vpop.permute.xlu0 %769
        %771 = vrot.lane.b32.xlu0 %v339, 9
        %v772 = vpop.permute.xlu0 %771
        %773 = vrot.lane.b32.xlu0 %v251, 9
        %v774 = vpop.permute.xlu0 %773
        %775 = vrot.lane.b32.xlu0 %v340, 9
        %v776 = vpop.permute.xlu0 %775
        %777 = vrot.lane.b32.xlu0 %v254, 9
        %v778 = vpop.permute.xlu0 %777
        %779 = vrot.lane.b32.xlu0 %v341, 9
        %v780 = vpop.permute.xlu0 %779
        %781 = vrot.lane.b32.xlu0 %v257, 9
        %v782 = vpop.permute.xlu0 %781
        %783 = vrot.lane.b32.xlu0 %v342, 9
        %v784 = vpop.permute.xlu0 %783
        %785 = vrot.lane.b32.xlu0 %v260, 9
        %v786 = vpop.permute.xlu0 %785
        %787 = vrot.lane.b32.xlu0 %v343, 9
        %v788 = vpop.permute.xlu0 %787
        %789 = vrot.lane.b32.xlu0 %v263, 9
        %v790 = vpop.permute.xlu0 %789
        %791 = vrot.lane.b32.xlu0 %v344, 9
        %v792 = vpop.permute.xlu0 %791
        %793 = vrot.lane.b32.xlu0 %v266, 9
        %v794 = vpop.permute.xlu0 %793
        %795 = vrot.lane.b32.xlu0 %v345, 9
        %v796 = vpop.permute.xlu0 %795
        %797 = vrot.lane.b32.xlu0 %v269, 9
        %v798 = vpop.permute.xlu0 %797
        %799 = vrot.lane.b32.xlu0 %v346, 9
        %v800 = vpop.permute.xlu0 %799
        %801 = vrot.lane.b32.xlu0 %v272, 9
        %v802 = vpop.permute.xlu0 %801
        %803 = vrot.lane.b32.xlu0 %v347, 9
        %v804 = vpop.permute.xlu0 %803
        %805 = vrot.lane.b32.xlu0 %v275, 9
        %v806 = vpop.permute.xlu0 %805
        %807 = vrot.lane.b32.xlu0 %v348, 9
        %v808 = vpop.permute.xlu0 %807
        %809 = vrot.lane.b32.xlu0 %v278, 9
        %v810 = vpop.permute.xlu0 %809
        %811 = vrot.lane.b32.xlu0 %v349, 9
        %v812 = vpop.permute.xlu0 %811
        %813 = vrot.lane.b32.xlu0 %v281, 9
        %v814 = vpop.permute.xlu0 %813
        %815 = vrot.lane.b32.xlu0 %v350, 9
        %v816 = vpop.permute.xlu0 %815
        %817 = vrot.lane.b32.xlu0 %v284, 9
        %v818 = vpop.permute.xlu0 %817
        %v852 = vrot.slane %v350, 1
        %v853 = vrot.slane %v284, 1
        %v854 = vsel %vm400, %v852, %v853
        %v855 = vrot.slane %v367, 1
        %v856 = vsel %vm400, %v853, %v855
        %857 = vrot.lane.b32.xlu0 %v408, 12
        %v858 = vpop.permute.xlu0 %857
        %859 = vrot.lane.b32.xlu0 %v410, 12
        %v860 = vpop.permute.xlu0 %859
        %861 = vrot.lane.b32.xlu0 %v413, 12
        %v862 = vpop.permute.xlu0 %861
        %863 = vrot.lane.b32.xlu0 %v415, 12
        %v864 = vpop.permute.xlu0 %863
        %865 = vrot.lane.b32.xlu0 %v418, 12
        %v866 = vpop.permute.xlu0 %865
        %867 = vrot.lane.b32.xlu0 %v420, 12
        %v868 = vpop.permute.xlu0 %867
        %869 = vrot.lane.b32.xlu0 %v423, 12
        %v870 = vpop.permute.xlu0 %869
        %871 = vrot.lane.b32.xlu0 %v425, 12
        %v872 = vpop.permute.xlu0 %871
        %873 = vrot.lane.b32.xlu0 %v428, 12
        %v874 = vpop.permute.xlu0 %873
        %875 = vrot.lane.b32.xlu0 %v430, 12
        %v876 = vpop.permute.xlu0 %875
        %877 = vrot.lane.b32.xlu0 %v433, 12
        %v878 = vpop.permute.xlu0 %877
        %879 = vrot.lane.b32.xlu0 %v435, 12
        %v880 = vpop.permute.xlu0 %879
        %881 = vrot.lane.b32.xlu0 %v438, 12
        %v882 = vpop.permute.xlu0 %881
        %883 = vrot.lane.b32.xlu0 %v440, 12
        %v884 = vpop.permute.xlu0 %883
        %885 = vrot.lane.b32.xlu0 %v443, 12
        %v886 = vpop.permute.xlu0 %885
        %887 = vrot.lane.b32.xlu0 %v445, 12
        %v888 = vpop.permute.xlu0 %887
        %889 = vrot.lane.b32.xlu0 %v448, 12
        %v890 = vpop.permute.xlu0 %889
        %891 = vrot.lane.b32.xlu0 %v450, 12
        %v892 = vpop.permute.xlu0 %891
        %893 = vrot.lane.b32.xlu0 %v453, 12
        %v894 = vpop.permute.xlu0 %893
        %895 = vrot.lane.b32.xlu0 %v455, 12
        %v896 = vpop.permute.xlu0 %895
        %897 = vrot.lane.b32.xlu0 %v458, 12
        %v898 = vpop.permute.xlu0 %897
        %899 = vrot.lane.b32.xlu0 %v460, 12
        %v900 = vpop.permute.xlu0 %899
        %901 = vrot.lane.b32.xlu0 %v463, 12
        %v902 = vpop.permute.xlu0 %901
        %903 = vrot.lane.b32.xlu0 %v465, 12
        %v904 = vpop.permute.xlu0 %903
        %905 = vrot.lane.b32.xlu0 %v468, 12
        %v906 = vpop.permute.xlu0 %905
        %907 = vrot.lane.b32.xlu0 %v470, 12
        %v908 = vpop.permute.xlu0 %907
        %909 = vrot.lane.b32.xlu0 %v473, 12
        %v910 = vpop.permute.xlu0 %909
        %911 = vrot.lane.b32.xlu0 %v475, 12
        %v912 = vpop.permute.xlu0 %911
        %913 = vrot.lane.b32.xlu0 %v478, 12
        %v914 = vpop.permute.xlu0 %913
        %915 = vrot.lane.b32.xlu0 %v480, 12
        %v916 = vpop.permute.xlu0 %915
        %917 = vrot.lane.b32.xlu0 %v854, 12
        %v918 = vpop.permute.xlu0 %917
        %919 = vrot.lane.b32.xlu0 %v856, 12
        %v920 = vpop.permute.xlu0 %919
        %v953 = vrot.slane %v350, 2
        %v954 = vrot.slane %v284, 2
        %v955 = vsel %vm577, %v953, %v954
        %v956 = vrot.slane %v367, 2
        %v957 = vsel %vm577, %v954, %v956
        %958 = vrot.lane.b32.xlu0 %v585, 15
        %v959 = vpop.permute.xlu0 %958
        %960 = vrot.lane.b32.xlu0 %v587, 15
        %v961 = vpop.permute.xlu0 %960
        %962 = vrot.lane.b32.xlu0 %v590, 15
        %v963 = vpop.permute.xlu0 %962
        %964 = vrot.lane.b32.xlu0 %v592, 15
        %v965 = vpop.permute.xlu0 %964
        %966 = vrot.lane.b32.xlu0 %v595, 15
        %v967 = vpop.permute.xlu0 %966
        %968 = vrot.lane.b32.xlu0 %v597, 15
        %v969 = vpop.permute.xlu0 %968
        %970 = vrot.lane.b32.xlu0 %v600, 15
        %v971 = vpop.permute.xlu0 %970
        %972 = vrot.lane.b32.xlu0 %v602, 15
        %v973 = vpop.permute.xlu0 %972
        %974 = vrot.lane.b32.xlu0 %v605, 15
        %v975 = vpop.permute.xlu0 %974
        %976 = vrot.lane.b32.xlu0 %v607, 15
        %v977 = vpop.permute.xlu0 %976
        %978 = vrot.lane.b32.xlu0 %v610, 15
        %v979 = vpop.permute.xlu0 %978
        %980 = vrot.lane.b32.xlu0 %v612, 15
        %v981 = vpop.permute.xlu0 %980
        %982 = vrot.lane.b32.xlu0 %v615, 15
        %v983 = vpop.permute.xlu0 %982
        %984 = vrot.lane.b32.xlu0 %v617, 15
        %v985 = vpop.permute.xlu0 %984
        %986 = vrot.lane.b32.xlu0 %v620, 15
        %v987 = vpop.permute.xlu0 %986
        %988 = vrot.lane.b32.xlu0 %v622, 15
        %v989 = vpop.permute.xlu0 %988
        %990 = vrot.lane.b32.xlu0 %v625, 15
        %v991 = vpop.permute.xlu0 %990
        %992 = vrot.lane.b32.xlu0 %v627, 15
        %v993 = vpop.permute.xlu0 %992
        %994 = vrot.lane.b32.xlu0 %v630, 15
        %v995 = vpop.permute.xlu0 %994
        %996 = vrot.lane.b32.xlu0 %v632, 15
        %v997 = vpop.permute.xlu0 %996
        %998 = vrot.lane.b32.xlu0 %v635, 15
        %v999 = vpop.permute.xlu0 %998
        %1000 = vrot.lane.b32.xlu0 %v637, 15
        %v1001 = vpop.permute.xlu0 %1000
        %1002 = vrot.lane.b32.xlu0 %v640, 15
        %v1003 = vpop.permute.xlu0 %1002
        %1004 = vrot.lane.b32.xlu0 %v642, 15
        %v1005 = vpop.permute.xlu0 %1004
        %1006 = vrot.lane.b32.xlu0 %v645, 15
        %v1007 = vpop.permute.xlu0 %1006
        %1008 = vrot.lane.b32.xlu0 %v647, 15
        %v1009 = vpop.permute.xlu0 %1008
        %1010 = vrot.lane.b32.xlu0 %v650, 15
        %v1011 = vpop.permute.xlu0 %1010
        %1012 = vrot.lane.b32.xlu0 %v652, 15
        %v1013 = vpop.permute.xlu0 %1012
        %1014 = vrot.lane.b32.xlu0 %v655, 15
        %v1015 = vpop.permute.xlu0 %1014
        %1016 = vrot.lane.b32.xlu0 %v657, 15
        %v1017 = vpop.permute.xlu0 %1016
        %1018 = vrot.lane.b32.xlu0 %v955, 15
        %v1019 = vpop.permute.xlu0 %1018
        %1020 = vrot.lane.b32.xlu0 %v957, 15
        %v1021 = vpop.permute.xlu0 %1020
        %1054 = vrot.lane.b32.xlu0 %v336, 18
        %v1055 = vpop.permute.xlu0 %1054
        %1056 = vrot.lane.b32.xlu0 %v242, 18
        %v1057 = vpop.permute.xlu0 %1056
        %1058 = vrot.lane.b32.xlu0 %v337, 18
        %v1059 = vpop.permute.xlu0 %1058
        %1060 = vrot.lane.b32.xlu0 %v245, 18
        %v1061 = vpop.permute.xlu0 %1060
        %1062 = vrot.lane.b32.xlu0 %v338, 18
        %v1063 = vpop.permute.xlu0 %1062
        %1064 = vrot.lane.b32.xlu0 %v248, 18
        %v1065 = vpop.permute.xlu0 %1064
        %1066 = vrot.lane.b32.xlu0 %v339, 18
        %v1067 = vpop.permute.xlu0 %1066
        %1068 = vrot.lane.b32.xlu0 %v251, 18
        %v1069 = vpop.permute.xlu0 %1068
        %1070 = vrot.lane.b32.xlu0 %v340, 18
        %v1071 = vpop.permute.xlu0 %1070
        %1072 = vrot.lane.b32.xlu0 %v254, 18
        %v1073 = vpop.permute.xlu0 %1072
        %1074 = vrot.lane.b32.xlu0 %v341, 18
        %v1075 = vpop.permute.xlu0 %1074
        %1076 = vrot.lane.b32.xlu0 %v257, 18
        %v1077 = vpop.permute.xlu0 %1076
        %1078 = vrot.lane.b32.xlu0 %v342, 18
        %v1079 = vpop.permute.xlu0 %1078
        %1080 = vrot.lane.b32.xlu0 %v260, 18
        %v1081 = vpop.permute.xlu0 %1080
        %1082 = vrot.lane.b32.xlu0 %v343, 18
        %v1083 = vpop.permute.xlu0 %1082
        %1084 = vrot.lane.b32.xlu0 %v263, 18
        %v1085 = vpop.permute.xlu0 %1084
        %1086 = vrot.lane.b32.xlu0 %v344, 18
        %v1087 = vpop.permute.xlu0 %1086
        %1088 = vrot.lane.b32.xlu0 %v266, 18
        %v1089 = vpop.permute.xlu0 %1088
        %1090 = vrot.lane.b32.xlu0 %v345, 18
        %v1091 = vpop.permute.xlu0 %1090
        %1092 = vrot.lane.b32.xlu0 %v269, 18
        %v1093 = vpop.permute.xlu0 %1092
        %1094 = vrot.lane.b32.xlu0 %v346, 18
        %v1095 = vpop.permute.xlu0 %1094
        %1096 = vrot.lane.b32.xlu0 %v272, 18
        %v1097 = vpop.permute.xlu0 %1096
        %1098 = vrot.lane.b32.xlu0 %v347, 18
        %v1099 = vpop.permute.xlu0 %1098
        %1100 = vrot.lane.b32.xlu0 %v275, 18
        %v1101 = vpop.permute.xlu0 %1100
        %1102 = vrot.lane.b32.xlu0 %v348, 18
        %v1103 = vpop.permute.xlu0 %1102
        %1104 = vrot.lane.b32.xlu0 %v278, 18
        %v1105 = vpop.permute.xlu0 %1104
        %1106 = vrot.lane.b32.xlu0 %v349, 18
        %v1107 = vpop.permute.xlu0 %1106
        %1108 = vrot.lane.b32.xlu0 %v281, 18
        %v1109 = vpop.permute.xlu0 %1108
        %1110 = vrot.lane.b32.xlu0 %v350, 18
        %v1111 = vpop.permute.xlu0 %1110
        %1112 = vrot.lane.b32.xlu0 %v284, 18
        %v1113 = vpop.permute.xlu0 %1112
        %1114 = vrot.lane.b32.xlu0 %v334, 18
        %v1115 = vpop.permute.xlu0 %1114
        %1116 = vrot.lane.b32.xlu0 %v236, 18
        %v1117 = vpop.permute.xlu0 %1116
        %1150 = vrot.lane.b32.xlu0 %v413, 21
        %v1151 = vpop.permute.xlu0 %1150
        %1152 = vrot.lane.b32.xlu0 %v415, 21
        %v1153 = vpop.permute.xlu0 %1152
        %1154 = vrot.lane.b32.xlu0 %v418, 21
        %v1155 = vpop.permute.xlu0 %1154
        %1156 = vrot.lane.b32.xlu0 %v420, 21
        %v1157 = vpop.permute.xlu0 %1156
        %1158 = vrot.lane.b32.xlu0 %v423, 21
        %v1159 = vpop.permute.xlu0 %1158
        %1160 = vrot.lane.b32.xlu0 %v425, 21
        %v1161 = vpop.permute.xlu0 %1160
        %1162 = vrot.lane.b32.xlu0 %v428, 21
        %v1163 = vpop.permute.xlu0 %1162
        %1164 = vrot.lane.b32.xlu0 %v430, 21
        %v1165 = vpop.permute.xlu0 %1164
        %1166 = vrot.lane.b32.xlu0 %v433, 21
        %v1167 = vpop.permute.xlu0 %1166
        %1168 = vrot.lane.b32.xlu0 %v435, 21
        %v1169 = vpop.permute.xlu0 %1168
        %1170 = vrot.lane.b32.xlu0 %v438, 21
        %v1171 = vpop.permute.xlu0 %1170
        %1172 = vrot.lane.b32.xlu0 %v440, 21
        %v1173 = vpop.permute.xlu0 %1172
        %1174 = vrot.lane.b32.xlu0 %v443, 21
        %v1175 = vpop.permute.xlu0 %1174
        %1176 = vrot.lane.b32.xlu0 %v445, 21
        %v1177 = vpop.permute.xlu0 %1176
        %1178 = vrot.lane.b32.xlu0 %v448, 21
        %v1179 = vpop.permute.xlu0 %1178
        %1180 = vrot.lane.b32.xlu0 %v450, 21
        %v1181 = vpop.permute.xlu0 %1180
        %1182 = vrot.lane.b32.xlu0 %v453, 21
        %v1183 = vpop.permute.xlu0 %1182
        %1184 = vrot.lane.b32.xlu0 %v455, 21
        %v1185 = vpop.permute.xlu0 %1184
        %1186 = vrot.lane.b32.xlu0 %v458, 21
        %v1187 = vpop.permute.xlu0 %1186
        %1188 = vrot.lane.b32.xlu0 %v460, 21
        %v1189 = vpop.permute.xlu0 %1188
        %1190 = vrot.lane.b32.xlu0 %v463, 21
        %v1191 = vpop.permute.xlu0 %1190
        %1192 = vrot.lane.b32.xlu0 %v465, 21
        %v1193 = vpop.permute.xlu0 %1192
        %1194 = vrot.lane.b32.xlu0 %v468, 21
        %v1195 = vpop.permute.xlu0 %1194
        %1196 = vrot.lane.b32.xlu0 %v470, 21
        %v1197 = vpop.permute.xlu0 %1196
        %1198 = vrot.lane.b32.xlu0 %v473, 21
        %v1199 = vpop.permute.xlu0 %1198
        %1200 = vrot.lane.b32.xlu0 %v475, 21
        %v1201 = vpop.permute.xlu0 %1200
        %1202 = vrot.lane.b32.xlu0 %v478, 21
        %v1203 = vpop.permute.xlu0 %1202
        %1204 = vrot.lane.b32.xlu0 %v480, 21
        %v1205 = vpop.permute.xlu0 %1204
        %1206 = vrot.lane.b32.xlu0 %v854, 21
        %v1207 = vpop.permute.xlu0 %1206
        %1208 = vrot.lane.b32.xlu0 %v856, 21
        %v1209 = vpop.permute.xlu0 %1208
        %1210 = vrot.lane.b32.xlu0 %v403, 21
        %v1211 = vpop.permute.xlu0 %1210
        %1212 = vrot.lane.b32.xlu0 %v405, 21
        %v1213 = vpop.permute.xlu0 %1212
        %1246 = vrot.lane.b32.xlu0 %v590, 24
        %v1247 = vpop.permute.xlu0 %1246
        %1248 = vrot.lane.b32.xlu0 %v592, 24
        %v1249 = vpop.permute.xlu0 %1248
        %1250 = vrot.lane.b32.xlu0 %v595, 24
        %v1251 = vpop.permute.xlu0 %1250
        %1252 = vrot.lane.b32.xlu0 %v597, 24
        %v1253 = vpop.permute.xlu0 %1252
        %1254 = vrot.lane.b32.xlu0 %v600, 24
        %v1255 = vpop.permute.xlu0 %1254
        %1256 = vrot.lane.b32.xlu0 %v602, 24
        %v1257 = vpop.permute.xlu0 %1256
        %1258 = vrot.lane.b32.xlu0 %v605, 24
        %v1259 = vpop.permute.xlu0 %1258
        %1260 = vrot.lane.b32.xlu0 %v607, 24
        %v1261 = vpop.permute.xlu0 %1260
        %1262 = vrot.lane.b32.xlu0 %v610, 24
        %v1263 = vpop.permute.xlu0 %1262
        %1264 = vrot.lane.b32.xlu0 %v612, 24
        %v1265 = vpop.permute.xlu0 %1264
        %1266 = vrot.lane.b32.xlu0 %v615, 24
        %v1267 = vpop.permute.xlu0 %1266
        %1268 = vrot.lane.b32.xlu0 %v617, 24
        %v1269 = vpop.permute.xlu0 %1268
        %1270 = vrot.lane.b32.xlu0 %v620, 24
        %v1271 = vpop.permute.xlu0 %1270
        %1272 = vrot.lane.b32.xlu0 %v622, 24
        %v1273 = vpop.permute.xlu0 %1272
        %1274 = vrot.lane.b32.xlu0 %v625, 24
        %v1275 = vpop.permute.xlu0 %1274
        %1276 = vrot.lane.b32.xlu0 %v627, 24
        %v1277 = vpop.permute.xlu0 %1276
        %1278 = vrot.lane.b32.xlu0 %v630, 24
        %v1279 = vpop.permute.xlu0 %1278
        %1280 = vrot.lane.b32.xlu0 %v632, 24
        %v1281 = vpop.permute.xlu0 %1280
        %1282 = vrot.lane.b32.xlu0 %v635, 24
        %v1283 = vpop.permute.xlu0 %1282
        %1284 = vrot.lane.b32.xlu0 %v637, 24
        %v1285 = vpop.permute.xlu0 %1284
        %1286 = vrot.lane.b32.xlu0 %v640, 24
        %v1287 = vpop.permute.xlu0 %1286
        %1288 = vrot.lane.b32.xlu0 %v642, 24
        %v1289 = vpop.permute.xlu0 %1288
        %1290 = vrot.lane.b32.xlu0 %v645, 24
        %v1291 = vpop.permute.xlu0 %1290
        %1292 = vrot.lane.b32.xlu0 %v647, 24
        %v1293 = vpop.permute.xlu0 %1292
        %1294 = vrot.lane.b32.xlu0 %v650, 24
        %v1295 = vpop.permute.xlu0 %1294
        %1296 = vrot.lane.b32.xlu0 %v652, 24
        %v1297 = vpop.permute.xlu0 %1296
        %1298 = vrot.lane.b32.xlu0 %v655, 24
        %v1299 = vpop.permute.xlu0 %1298
        %1300 = vrot.lane.b32.xlu0 %v657, 24
        %v1301 = vpop.permute.xlu0 %1300
        %1302 = vrot.lane.b32.xlu0 %v955, 24
        %v1303 = vpop.permute.xlu0 %1302
        %1304 = vrot.lane.b32.xlu0 %v957, 24
        %v1305 = vpop.permute.xlu0 %1304
        %1306 = vrot.lane.b32.xlu0 %v580, 24
        %v1307 = vpop.permute.xlu0 %1306
        %1308 = vrot.lane.b32.xlu0 %v582, 24
        %v1309 = vpop.permute.xlu0 %1308
        %vm1342 = vcmask 23552
        %v1343 = vsel %vm1342, %v334, %v482
        %v1344 = vsel %vm1342, %v236, %v484
        %v1345 = vsel %vm1342, %v335, %v486
        %v1346 = vsel %vm1342, %v239, %v488
        %v1347 = vsel %vm1342, %v336, %v490
        %v1348 = vsel %vm1342, %v242, %v492
        %v1349 = vsel %vm1342, %v337, %v494
        %v1350 = vsel %vm1342, %v245, %v496
        %v1351 = vsel %vm1342, %v338, %v498
        %v1352 = vsel %vm1342, %v248, %v500
        %v1353 = vsel %vm1342, %v339, %v502
        %v1354 = vsel %vm1342, %v251, %v504
        %v1355 = vsel %vm1342, %v340, %v506
        %v1356 = vsel %vm1342, %v254, %v508
        %v1357 = vsel %vm1342, %v341, %v510
        %v1358 = vsel %vm1342, %v257, %v512
        %v1359 = vsel %vm1342, %v342, %v514
        %v1360 = vsel %vm1342, %v260, %v516
        %v1361 = vsel %vm1342, %v343, %v518
        %v1362 = vsel %vm1342, %v263, %v520
        %v1363 = vsel %vm1342, %v344, %v522
        %v1364 = vsel %vm1342, %v266, %v524
        %v1365 = vsel %vm1342, %v345, %v526
        %v1366 = vsel %vm1342, %v269, %v528
        %v1367 = vsel %vm1342, %v346, %v530
        %v1368 = vsel %vm1342, %v272, %v532
        %v1369 = vsel %vm1342, %v347, %v534
        %v1370 = vsel %vm1342, %v275, %v536
        %v1371 = vsel %vm1342, %v348, %v538
        %v1372 = vsel %vm1342, %v278, %v540
        %v1373 = vsel %vm1342, %v349, %v542
        %v1374 = vsel %vm1342, %v281, %v544
        %vm1375 = vcmask 48128
        %v1376 = vsel %vm1375, %v1343, %v659
        %v1377 = vsel %vm1375, %v1344, %v661
        %v1378 = vsel %vm1375, %v1345, %v663
        %v1379 = vsel %vm1375, %v1346, %v665
        %v1380 = vsel %vm1375, %v1347, %v667
        %v1381 = vsel %vm1375, %v1348, %v669
        %v1382 = vsel %vm1375, %v1349, %v671
        %v1383 = vsel %vm1375, %v1350, %v673
        %v1384 = vsel %vm1375, %v1351, %v675
        %v1385 = vsel %vm1375, %v1352, %v677
        %v1386 = vsel %vm1375, %v1353, %v679
        %v1387 = vsel %vm1375, %v1354, %v681
        %v1388 = vsel %vm1375, %v1355, %v683
        %v1389 = vsel %vm1375, %v1356, %v685
        %v1390 = vsel %vm1375, %v1357, %v687
        %v1391 = vsel %vm1375, %v1358, %v689
        %v1392 = vsel %vm1375, %v1359, %v691
        %v1393 = vsel %vm1375, %v1360, %v693
        %v1394 = vsel %vm1375, %v1361, %v695
        %v1395 = vsel %vm1375, %v1362, %v697
        %v1396 = vsel %vm1375, %v1363, %v699
        %v1397 = vsel %vm1375, %v1364, %v701
        %v1398 = vsel %vm1375, %v1365, %v703
        %v1399 = vsel %vm1375, %v1366, %v705
        %v1400 = vsel %vm1375, %v1367, %v707
        %v1401 = vsel %vm1375, %v1368, %v709
        %v1402 = vsel %vm1375, %v1369, %v711
        %v1403 = vsel %vm1375, %v1370, %v713
        %v1404 = vsel %vm1375, %v1371, %v715
        %v1405 = vsel %vm1375, %v1372, %v717
        %v1406 = vsel %vm1375, %v1373, %v719
        %v1407 = vsel %vm1375, %v1374, %v721
        %vm1408 = vcmask 72704
        %v1409 = vsel %vm1408, %v1376, %v756
        %v1410 = vsel %vm1408, %v1377, %v758
        %v1411 = vsel %vm1408, %v1378, %v760
        %v1412 = vsel %vm1408, %v1379, %v762
        %v1413 = vsel %vm1408, %v1380, %v764
        %v1414 = vsel %vm1408, %v1381, %v766
        %v1415 = vsel %vm1408, %v1382, %v768
        %v1416 = vsel %vm1408, %v1383, %v770
        %v1417 = vsel %vm1408, %v1384, %v772
        %v1418 = vsel %vm1408, %v1385, %v774
        %v1419 = vsel %vm1408, %v1386, %v776
        %v1420 = vsel %vm1408, %v1387, %v778
        %v1421 = vsel %vm1408, %v1388, %v780
        %v1422 = vsel %vm1408, %v1389, %v782
        %v1423 = vsel %vm1408, %v1390, %v784
        %v1424 = vsel %vm1408, %v1391, %v786
        %v1425 = vsel %vm1408, %v1392, %v788
        %v1426 = vsel %vm1408, %v1393, %v790
        %v1427 = vsel %vm1408, %v1394, %v792
        %v1428 = vsel %vm1408, %v1395, %v794
        %v1429 = vsel %vm1408, %v1396, %v796
        %v1430 = vsel %vm1408, %v1397, %v798
        %v1431 = vsel %vm1408, %v1398, %v800
        %v1432 = vsel %vm1408, %v1399, %v802
        %v1433 = vsel %vm1408, %v1400, %v804
        %v1434 = vsel %vm1408, %v1401, %v806
        %v1435 = vsel %vm1408, %v1402, %v808
        %v1436 = vsel %vm1408, %v1403, %v810
        %v1437 = vsel %vm1408, %v1404, %v812
        %v1438 = vsel %vm1408, %v1405, %v814
        %v1439 = vsel %vm1408, %v1406, %v816
        %v1440 = vsel %vm1408, %v1407, %v818
        %vm1441 = vcmask 97280
        %v1442 = vsel %vm1441, %v1409, %v858
        %v1443 = vsel %vm1441, %v1410, %v860
        %v1444 = vsel %vm1441, %v1411, %v862
        %v1445 = vsel %vm1441, %v1412, %v864
        %v1446 = vsel %vm1441, %v1413, %v866
        %v1447 = vsel %vm1441, %v1414, %v868
        %v1448 = vsel %vm1441, %v1415, %v870
        %v1449 = vsel %vm1441, %v1416, %v872
        %v1450 = vsel %vm1441, %v1417, %v874
        %v1451 = vsel %vm1441, %v1418, %v876
        %v1452 = vsel %vm1441, %v1419, %v878
        %v1453 = vsel %vm1441, %v1420, %v880
        %v1454 = vsel %vm1441, %v1421, %v882
        %v1455 = vsel %vm1441, %v1422, %v884
        %v1456 = vsel %vm1441, %v1423, %v886
        %v1457 = vsel %vm1441, %v1424, %v888
        %v1458 = vsel %vm1441, %v1425, %v890
        %v1459 = vsel %vm1441, %v1426, %v892
        %v1460 = vsel %vm1441, %v1427, %v894
        %v1461 = vsel %vm1441, %v1428, %v896
        %v1462 = vsel %vm1441, %v1429, %v898
        %v1463 = vsel %vm1441, %v1430, %v900
        %v1464 = vsel %vm1441, %v1431, %v902
        %v1465 = vsel %vm1441, %v1432, %v904
        %v1466 = vsel %vm1441, %v1433, %v906
        %v1467 = vsel %vm1441, %v1434, %v908
        %v1468 = vsel %vm1441, %v1435, %v910
        %v1469 = vsel %vm1441, %v1436, %v912
        %v1470 = vsel %vm1441, %v1437, %v914
        %v1471 = vsel %vm1441, %v1438, %v916
        %v1472 = vsel %vm1441, %v1439, %v918
        %v1473 = vsel %vm1441, %v1440, %v920
        %vm1474 = vcmask 121856
        %v1475 = vsel %vm1474, %v1442, %v959
        %v1476 = vsel %vm1474, %v1443, %v961
        %v1477 = vsel %vm1474, %v1444, %v963
        %v1478 = vsel %vm1474, %v1445, %v965
        %v1479 = vsel %vm1474, %v1446, %v967
        %v1480 = vsel %vm1474, %v1447, %v969
        %v1481 = vsel %vm1474, %v1448, %v971
        %v1482 = vsel %vm1474, %v1449, %v973
        %v1483 = vsel %vm1474, %v1450, %v975
        %v1484 = vsel %vm1474, %v1451, %v977
        %v1485 = vsel %vm1474, %v1452, %v979
        %v1486 = vsel %vm1474, %v1453, %v981
        %v1487 = vsel %vm1474, %v1454, %v983
        %v1488 = vsel %vm1474, %v1455, %v985
        %v1489 = vsel %vm1474, %v1456, %v987
        %v1490 = vsel %vm1474, %v1457, %v989
        %v1491 = vsel %vm1474, %v1458, %v991
        %v1492 = vsel %vm1474, %v1459, %v993
        %v1493 = vsel %vm1474, %v1460, %v995
        %v1494 = vsel %vm1474, %v1461, %v997
        %v1495 = vsel %vm1474, %v1462, %v999
        %v1496 = vsel %vm1474, %v1463, %v1001
        %v1497 = vsel %vm1474, %v1464, %v1003
        %v1498 = vsel %vm1474, %v1465, %v1005
        %v1499 = vsel %vm1474, %v1466, %v1007
        %v1500 = vsel %vm1474, %v1467, %v1009
        %v1501 = vsel %vm1474, %v1468, %v1011
        %v1502 = vsel %vm1474, %v1469, %v1013
        %v1503 = vsel %vm1474, %v1470, %v1015
        %v1504 = vsel %vm1474, %v1471, %v1017
        %v1505 = vsel %vm1474, %v1472, %v1019
        %v1506 = vsel %vm1474, %v1473, %v1021
        %vm1507 = vcmask 146432
        %v1508 = vsel %vm1507, %v1475, %v1055
        %v1509 = vsel %vm1507, %v1476, %v1057
        %v1510 = vsel %vm1507, %v1477, %v1059
        %v1511 = vsel %vm1507, %v1478, %v1061
        %v1512 = vsel %vm1507, %v1479, %v1063
        %v1513 = vsel %vm1507, %v1480, %v1065
        %v1514 = vsel %vm1507, %v1481, %v1067
        %v1515 = vsel %vm1507, %v1482, %v1069
        %v1516 = vsel %vm1507, %v1483, %v1071
        %v1517 = vsel %vm1507, %v1484, %v1073
        %v1518 = vsel %vm1507, %v1485, %v1075
        %v1519 = vsel %vm1507, %v1486, %v1077
        %v1520 = vsel %vm1507, %v1487, %v1079
        %v1521 = vsel %vm1507, %v1488, %v1081
        %v1522 = vsel %vm1507, %v1489, %v1083
        %v1523 = vsel %vm1507, %v1490, %v1085
        %v1524 = vsel %vm1507, %v1491, %v1087
        %v1525 = vsel %vm1507, %v1492, %v1089
        %v1526 = vsel %vm1507, %v1493, %v1091
        %v1527 = vsel %vm1507, %v1494, %v1093
        %v1528 = vsel %vm1507, %v1495, %v1095
        %v1529 = vsel %vm1507, %v1496, %v1097
        %v1530 = vsel %vm1507, %v1497, %v1099
        %v1531 = vsel %vm1507, %v1498, %v1101
        %v1532 = vsel %vm1507, %v1499, %v1103
        %v1533 = vsel %vm1507, %v1500, %v1105
        %v1534 = vsel %vm1507, %v1501, %v1107
        %v1535 = vsel %vm1507, %v1502, %v1109
        %v1536 = vsel %vm1507, %v1503, %v1111
        %v1537 = vsel %vm1507, %v1504, %v1113
        %v1538 = vsel %vm1507, %v1505, %v1115
        %v1539 = vsel %vm1507, %v1506, %v1117
        %vm1540 = vcmask 171008
        %v1541 = vsel %vm1540, %v1508, %v1151
        %v1542 = vsel %vm1540, %v1509, %v1153
        %v1543 = vsel %vm1540, %v1510, %v1155
        %v1544 = vsel %vm1540, %v1511, %v1157
        %v1545 = vsel %vm1540, %v1512, %v1159
        %v1546 = vsel %vm1540, %v1513, %v1161
        %v1547 = vsel %vm1540, %v1514, %v1163
        %v1548 = vsel %vm1540, %v1515, %v1165
        %v1549 = vsel %vm1540, %v1516, %v1167
        %v1550 = vsel %vm1540, %v1517, %v1169
        %v1551 = vsel %vm1540, %v1518, %v1171
        %v1552 = vsel %vm1540, %v1519, %v1173
        %v1553 = vsel %vm1540, %v1520, %v1175
        %v1554 = vsel %vm1540, %v1521, %v1177
        %v1555 = vsel %vm1540, %v1522, %v1179
        %v1556 = vsel %vm1540, %v1523, %v1181
        %v1557 = vsel %vm1540, %v1524, %v1183
        %v1558 = vsel %vm1540, %v1525, %v1185
        %v1559 = vsel %vm1540, %v1526, %v1187
        %v1560 = vsel %vm1540, %v1527, %v1189
        %v1561 = vsel %vm1540, %v1528, %v1191
        %v1562 = vsel %vm1540, %v1529, %v1193
        %v1563 = vsel %vm1540, %v1530, %v1195
        %v1564 = vsel %vm1540, %v1531, %v1197
        %v1565 = vsel %vm1540, %v1532, %v1199
        %v1566 = vsel %vm1540, %v1533, %v1201
        %v1567 = vsel %vm1540, %v1534, %v1203
        %v1568 = vsel %vm1540, %v1535, %v1205
        %v1569 = vsel %vm1540, %v1536, %v1207
        %v1570 = vsel %vm1540, %v1537, %v1209
        %v1571 = vsel %vm1540, %v1538, %v1211
        %v1572 = vsel %vm1540, %v1539, %v1213
        %vm1573 = vcmask 195584
        %v1574 = vsel %vm1573, %v1541, %v1247
        %v1575 = vsel %vm1573, %v1542, %v1249
        %v1576 = vsel %vm1573, %v1543, %v1251
        %v1577 = vsel %vm1573, %v1544, %v1253
        %v1578 = vsel %vm1573, %v1545, %v1255
        %v1579 = vsel %vm1573, %v1546, %v1257
        %v1580 = vsel %vm1573, %v1547, %v1259
        %v1581 = vsel %vm1573, %v1548, %v1261
        %v1582 = vsel %vm1573, %v1549, %v1263
        %v1583 = vsel %vm1573, %v1550, %v1265
        %v1584 = vsel %vm1573, %v1551, %v1267
        %v1585 = vsel %vm1573, %v1552, %v1269
        %v1586 = vsel %vm1573, %v1553, %v1271
        %v1587 = vsel %vm1573, %v1554, %v1273
        %v1588 = vsel %vm1573, %v1555, %v1275
        %v1589 = vsel %vm1573, %v1556, %v1277
        %v1590 = vsel %vm1573, %v1557, %v1279
        %v1591 = vsel %vm1573, %v1558, %v1281
        %v1592 = vsel %vm1573, %v1559, %v1283
        %v1593 = vsel %vm1573, %v1560, %v1285
        %v1594 = vsel %vm1573, %v1561, %v1287
        %v1595 = vsel %vm1573, %v1562, %v1289
        %v1596 = vsel %vm1573, %v1563, %v1291
        %v1597 = vsel %vm1573, %v1564, %v1293
        %v1598 = vsel %vm1573, %v1565, %v1295
        %v1599 = vsel %vm1573, %v1566, %v1297
        %v1600 = vsel %vm1573, %v1567, %v1299
        %v1601 = vsel %vm1573, %v1568, %v1301
        %v1602 = vsel %vm1573, %v1569, %v1303
        %v1603 = vsel %vm1573, %v1570, %v1305
        %v1604 = vsel %vm1573, %v1571, %v1307
        %v1605 = vsel %vm1573, %v1572, %v1309
        %v1606 = vld [vmem:[%s1] sm:$0xff]
        %v1607 = vld [vmem:[%s1 + $0x8] sm:$0xff]
        %v1608 = vld [vmem:[%s1 + $0x10] sm:$0xff]
        %v1609 = vld [vmem:[%s1 + $0x18] sm:$0x7]
        %v1610 = vld [vmem:[%s2] sm:$0x1]
        %v1612 = vlaneseq
        %v1613 = vshrl.u32 %v1612, 7
        %v1614 = vsub.s32 0, %v1613
        %v1615 = vrot.slane %v1610, %v1614
        %vm1617 = vcmask 220160
        %v1619 = vsel %vm1617, %v1574, 0
        %v1622 = vsel %vm1617, %v1575, 0
        %v1625 = vsel %vm1617, %v1576, 0
        %v1628 = vsel %vm1617, %v1577, 0
        %v1631 = vsel %vm1617, %v1578, 0
        %v1634 = vsel %vm1617, %v1579, 0
        %v1637 = vsel %vm1617, %v1580, 0
        %v1640 = vsel %vm1617, %v1581, 0
        %v1643 = vsel %vm1617, %v1582, 0
        %v1646 = vsel %vm1617, %v1583, 0
        %v1649 = vsel %vm1617, %v1584, 0
        %v1652 = vsel %vm1617, %v1585, 0
        %v1655 = vsel %vm1617, %v1586, 0
        %v1658 = vsel %vm1617, %v1587, 0
        %v1661 = vsel %vm1617, %v1588, 0
        %v1664 = vsel %vm1617, %v1589, 0
        %v1667 = vsel %vm1617, %v1590, 0
        %v1670 = vsel %vm1617, %v1591, 0
        %v1673 = vsel %vm1617, %v1592, 0
        %v1676 = vsel %vm1617, %v1593, 0
        %v1679 = vsel %vm1617, %v1594, 0
        %v1682 = vsel %vm1617, %v1595, 0
        %v1685 = vsel %vm1617, %v1596, 0
        %v1688 = vsel %vm1617, %v1597, 0
        %v1691 = vsel %vm1617, %v1598, 0
        %v1694 = vsel %vm1617, %v1599, 0
        %v1697 = vsel %vm1617, %v1600, 0
        %v1700 = vsel %vm1617, %v1601, 0
        %v1703 = vsel %vm1617, %v1602, 0
        %v1706 = vsel %vm1617, %v1603, 0
        %v1709 = vsel %vm1617, %v1604, 0
        %v1712 = vsel %vm1617, %v1605, 0
        %vm1714 = vcmask 1042432
        %v1716 = vsel %vm1714, %v1609, 0
        %1718 = vmatprep.subr.mxu0 0.0
        %1719 = vmatpush1.msra.mxu0 %v1606
        %1720 = vmatprep.subr.mxu0 0.0
        %1721 = vmatpush1.msra.mxu0 %v1607
        %1722 = vmatprep.subr.mxu0 0.0
        %1723 = vmatpush1.msra.mxu0 %v1608
        %1724 = vmatprep.subr.mxu0 0.0
        %1725 = vmatpush1.msra.mxu0 %v1716
        %1726 = vmatprep.subr.mxu0 0.0
        %1727 = vmatpush1.msra.mxu0 0.0
        %1728 = vmatprep.subr.mxu0 0.0
        %1729 = vmatpush1.msra.mxu0 0.0
        %1730 = vmatprep.subr.mxu0 0.0
        %1731 = vmatpush1.msra.mxu0 0.0
        %1732 = vmatprep.subr.mxu0 0.0
        %1733 = vmatpush1.msra.mxu0 0.0
        %1734 = vmatprep.subr.mxu0 0.0
        %1735 = vmatpush1.msra.mxu0 0.0
        %1736 = vmatprep.subr.mxu0 0.0
        %1737 = vmatpush1.msra.mxu0 0.0
        %1738 = vmatprep.subr.mxu0 0.0
        %1739 = vmatpush1.msra.mxu0 0.0
        %1740 = vmatprep.subr.mxu0 0.0
        %1741 = vmatpush1.msra.mxu0 0.0
        %1742 = vmatprep.subr.mxu0 0.0
        %1743 = vmatpush1.msra.mxu0 0.0
        %1744 = vmatprep.subr.mxu0 0.0
        %1745 = vmatpush1.msra.mxu0 0.0
        %1746 = vmatprep.subr.mxu0 0.0
        %1747 = vmatpush1.msra.mxu0 0.0
        %1748 = vmatprep.subr.mxu0 0.0
        %1749 = vmatpush1.msra.mxu0 0.0
        %1750 = vmatprep.subr.mxu0 0.0
        %1751 = vmatpush1.msra.mxu0 0.0
        %1752 = vmatprep.subr.mxu0 0.0
        %1753 = vmatpush1.msra.mxu0 0.0
        %1754 = vmatprep.subr.mxu0 0.0
        %1755 = vmatpush1.msra.mxu0 0.0
        %1756 = vmatprep.subr.mxu0 0.0
        %1757 = vmatpush1.msra.mxu0 0.0
        %1758 = vmatprep.subr.mxu0 0.0
        %1759 = vmatpush1.msra.mxu0 0.0
        %1760 = vmatprep.subr.mxu0 0.0
        %1761 = vmatpush1.msra.mxu0 0.0
        %1762 = vmatprep.subr.mxu0 0.0
        %1763 = vmatpush1.msra.mxu0 0.0
        %1764 = vmatprep.subr.mxu0 0.0
        %1765 = vmatpush1.msra.mxu0 0.0
        %1766 = vmatprep.subr.mxu0 0.0
        %1767 = vmatpush1.msra.mxu0 0.0
        %1768 = vmatprep.subr.mxu0 0.0
        %1769 = vmatpush1.msra.mxu0 0.0
        %1770 = vmatprep.subr.mxu0 0.0
        %1771 = vmatpush1.msra.mxu0 0.0
        %1772 = vmatprep.subr.mxu0 0.0
        %1773 = vmatpush1.msra.mxu0 0.0
        %1774 = vmatprep.subr.mxu0 0.0
        %1775 = vmatpush1.msra.mxu0 0.0
        %1776 = vmatprep.subr.mxu0 0.0
        %1777 = vmatpush1.msra.mxu0 0.0
        %1778 = vmatprep.subr.mxu0 0.0
        %1779 = vmatpush1.msra.mxu0 0.0
        %1780 = vmatprep.subr.mxu0 0.0
        %1781 = vmatpush1.msra.mxu0 0.0
        %1782 = vmatprep.mubr.f32.mxu0 0.0
        %1783 = vmatmul.mubr.f32.gmra.mrb[0].mxu0 %v1619
        %v1784 = vpop.f32.mrb[0].mxu0
        %v1785 = vadd.f32 %v1615, %v1784
        %v1786 = vpop.f32.mrb[0].mxu0
        %1787 = vmatprep.mubr.f32.mxu0 0.0
        %1788 = vmatmul.mubr.f32.gmra.mrb[0].mxu0 %v1622
        %v1789 = vpop.f32.mrb[0].mxu0
        %v1790 = vadd.f32 %v1615, %v1789
        %v1791 = vpop.f32.mrb[0].mxu0
        %1792 = vmatprep.mubr.f32.mxu0 0.0
        %1793 = vmatmul.mubr.f32.gmra.mrb[0].mxu0 %v1625
        %v1794 = vpop.f32.mrb[0].mxu0
        %v1795 = vadd.f32 %v1615, %v1794
        %v1796 = vpop.f32.mrb[0].mxu0
        %1797 = vmatprep.mubr.f32.mxu0 0.0
        %1798 = vmatmul.mubr.f32.gmra.mrb[0].mxu0 %v1628
        %v1799 = vpop.f32.mrb[0].mxu0
        %v1800 = vadd.f32 %v1615, %v1799
        %v1801 = vpop.f32.mrb[0].mxu0
        %1802 = vmatprep.mubr.f32.mxu0 0.0
        %1803 = vmatmul.mubr.f32.gmra.mrb[0].mxu0 %v1631
        %v1804 = vpop.f32.mrb[0].mxu0
        %v1805 = vadd.f32 %v1615, %v1804
        %v1806 = vpop.f32.mrb[0].mxu0
        %1807 = vmatprep.mubr.f32.mxu0 0.0
        %1808 = vmatmul.mubr.f32.gmra.mrb[0].mxu0 %v1634
        %v1809 = vpop.f32.mrb[0].mxu0
        %v1810 = vadd.f32 %v1615, %v1809
        %v1811 = vpop.f32.mrb[0].mxu0
        %1812 = vmatprep.mubr.f32.mxu0 0.0
        %1813 = vmatmul.mubr.f32.gmra.mrb[0].mxu0 %v1637
        %v1814 = vpop.f32.mrb[0].mxu0
        %v1815 = vadd.f32 %v1615, %v1814
        %v1816 = vpop.f32.mrb[0].mxu0
        %1817 = vmatprep.mubr.f32.mxu0 0.0
        %1818 = vmatmul.mubr.f32.gmra.mrb[0].mxu0 %v1640
        %v1819 = vpop.f32.mrb[0].mxu0
        %v1820 = vadd.f32 %v1615, %v1819
        %v1821 = vpop.f32.mrb[0].mxu0
        %1822 = vmatprep.mubr.f32.mxu0 0.0
        %1823 = vmatmul.mubr.f32.gmra.mrb[0].mxu0 %v1643
        %v1824 = vpop.f32.mrb[0].mxu0
        %v1825 = vadd.f32 %v1615, %v1824
        %v1826 = vpop.f32.mrb[0].mxu0
        %1827 = vmatprep.mubr.f32.mxu0 0.0
        %1828 = vmatmul.mubr.f32.gmra.mrb[0].mxu0 %v1646
        %v1829 = vpop.f32.mrb[0].mxu0
        %v1830 = vadd.f32 %v1615, %v1829
        %v1831 = vpop.f32.mrb[0].mxu0
        %1832 = vmatprep.mubr.f32.mxu0 0.0
        %1833 = vmatmul.mubr.f32.gmra.mrb[0].mxu0 %v1649
        %v1834 = vpop.f32.mrb[0].mxu0
        %v1835 = vadd.f32 %v1615, %v1834
        %v1836 = vpop.f32.mrb[0].mxu0
        %1837 = vmatprep.mubr.f32.mxu0 0.0
        %1838 = vmatmul.mubr.f32.gmra.mrb[0].mxu0 %v1652
        %v1839 = vpop.f32.mrb[0].mxu0
        %v1840 = vadd.f32 %v1615, %v1839
        %v1841 = vpop.f32.mrb[0].mxu0
        %1842 = vmatprep.mubr.f32.mxu0 0.0
        %1843 = vmatmul.mubr.f32.gmra.mrb[0].mxu0 %v1655
        %v1844 = vpop.f32.mrb[0].mxu0
        %v1845 = vadd.f32 %v1615, %v1844
        %v1846 = vpop.f32.mrb[0].mxu0
        %1847 = vmatprep.mubr.f32.mxu0 0.0
        %1848 = vmatmul.mubr.f32.gmra.mrb[0].mxu0 %v1658
        %v1849 = vpop.f32.mrb[0].mxu0
        %v1850 = vadd.f32 %v1615, %v1849
        %v1851 = vpop.f32.mrb[0].mxu0
        %1852 = vmatprep.mubr.f32.mxu0 0.0
        %1853 = vmatmul.mubr.f32.gmra.mrb[0].mxu0 %v1661
        %v1854 = vpop.f32.mrb[0].mxu0
        %v1855 = vadd.f32 %v1615, %v1854
        %v1856 = vpop.f32.mrb[0].mxu0
        %1857 = vmatprep.mubr.f32.mxu0 0.0
        %1858 = vmatmul.mubr.f32.gmra.mrb[0].mxu0 %v1664
        %v1859 = vpop.f32.mrb[0].mxu0
        %v1860 = vadd.f32 %v1615, %v1859
        %v1861 = vpop.f32.mrb[0].mxu0
        %1862 = vmatprep.mubr.f32.mxu0 0.0
        %1863 = vmatmul.mubr.f32.gmra.mrb[0].mxu0 %v1667
        %v1864 = vpop.f32.mrb[0].mxu0
        %v1865 = vadd.f32 %v1615, %v1864
        %v1866 = vpop.f32.mrb[0].mxu0
        %1867 = vmatprep.mubr.f32.mxu0 0.0
        %1868 = vmatmul.mubr.f32.gmra.mrb[0].mxu0 %v1670
        %v1869 = vpop.f32.mrb[0].mxu0
        %v1870 = vadd.f32 %v1615, %v1869
        %v1871 = vpop.f32.mrb[0].mxu0
        %1872 = vmatprep.mubr.f32.mxu0 0.0
        %1873 = vmatmul.mubr.f32.gmra.mrb[0].mxu0 %v1673
        %v1874 = vpop.f32.mrb[0].mxu0
        %v1875 = vadd.f32 %v1615, %v1874
        %v1876 = vpop.f32.mrb[0].mxu0
        %1877 = vmatprep.mubr.f32.mxu0 0.0
        %1878 = vmatmul.mubr.f32.gmra.mrb[0].mxu0 %v1676
        %v1879 = vpop.f32.mrb[0].mxu0
        %v1880 = vadd.f32 %v1615, %v1879
        %v1881 = vpop.f32.mrb[0].mxu0
        %1882 = vmatprep.mubr.f32.mxu0 0.0
        %1883 = vmatmul.mubr.f32.gmra.mrb[0].mxu0 %v1679
        %v1884 = vpop.f32.mrb[0].mxu0
        %v1885 = vadd.f32 %v1615, %v1884
        %v1886 = vpop.f32.mrb[0].mxu0
        %1887 = vmatprep.mubr.f32.mxu0 0.0
        %1888 = vmatmul.mubr.f32.gmra.mrb[0].mxu0 %v1682
        %v1889 = vpop.f32.mrb[0].mxu0
        %v1890 = vadd.f32 %v1615, %v1889
        %v1891 = vpop.f32.mrb[0].mxu0
        %1892 = vmatprep.mubr.f32.mxu0 0.0
        %1893 = vmatmul.mubr.f32.gmra.mrb[0].mxu0 %v1685
        %v1894 = vpop.f32.mrb[0].mxu0
        %v1895 = vadd.f32 %v1615, %v1894
        %v1896 = vpop.f32.mrb[0].mxu0
        %1897 = vmatprep.mubr.f32.mxu0 0.0
        %1898 = vmatmul.mubr.f32.gmra.mrb[0].mxu0 %v1688
        %v1899 = vpop.f32.mrb[0].mxu0
        %v1900 = vadd.f32 %v1615, %v1899
        %v1901 = vpop.f32.mrb[0].mxu0
        %1902 = vmatprep.mubr.f32.mxu0 0.0
        %1903 = vmatmul.mubr.f32.gmra.mrb[0].mxu0 %v1691
        %v1904 = vpop.f32.mrb[0].mxu0
        %v1905 = vadd.f32 %v1615, %v1904
        %v1906 = vpop.f32.mrb[0].mxu0
        %1907 = vmatprep.mubr.f32.mxu0 0.0
        %1908 = vmatmul.mubr.f32.gmra.mrb[0].mxu0 %v1694
        %v1909 = vpop.f32.mrb[0].mxu0
        %v1910 = vadd.f32 %v1615, %v1909
        %v1911 = vpop.f32.mrb[0].mxu0
        %1912 = vmatprep.mubr.f32.mxu0 0.0
        %1913 = vmatmul.mubr.f32.gmra.mrb[0].mxu0 %v1697
        %v1914 = vpop.f32.mrb[0].mxu0
        %v1915 = vadd.f32 %v1615, %v1914
        %v1916 = vpop.f32.mrb[0].mxu0
        %1917 = vmatprep.mubr.f32.mxu0 0.0
        %1918 = vmatmul.mubr.f32.gmra.mrb[0].mxu0 %v1700
        %v1919 = vpop.f32.mrb[0].mxu0
        %v1920 = vadd.f32 %v1615, %v1919
        %v1921 = vpop.f32.mrb[0].mxu0
        %1922 = vmatprep.mubr.f32.mxu0 0.0
        %1923 = vmatmul.mubr.f32.gmra.mrb[0].mxu0 %v1703
        %v1924 = vpop.f32.mrb[0].mxu0
        %v1925 = vadd.f32 %v1615, %v1924
        %v1926 = vpop.f32.mrb[0].mxu0
        %1927 = vmatprep.mubr.f32.mxu0 0.0
        %1928 = vmatmul.mubr.f32.gmra.mrb[0].mxu0 %v1706
        %v1929 = vpop.f32.mrb[0].mxu0
        %v1930 = vadd.f32 %v1615, %v1929
        %v1931 = vpop.f32.mrb[0].mxu0
        %1932 = vmatprep.mubr.f32.mxu0 0.0
        %1933 = vmatmul.mubr.f32.gmra.mrb[0].mxu0 %v1709
        %v1934 = vpop.f32.mrb[0].mxu0
        %v1935 = vadd.f32 %v1615, %v1934
        %v1936 = vpop.f32.mrb[0].mxu0
        %1937 = vmatprep.mubr.f32.mxu0 0.0
        %1938 = vmatmul.mubr.f32.gmra.mrb[0].mxu0 %v1712
        %v1939 = vpop.f32.mrb[0].mxu0
        %v1940 = vadd.f32 %v1615, %v1939
        %v1941 = vpop.f32.mrb[0].mxu0
        %1942 = vdwg.mxu0
        %v1943 = vmin.f32 %v1785, 20.0
        %v1944 = vmin.f32 %v1790, 20.0
        %v1945 = vmin.f32 %v1795, 20.0
        %v1946 = vmin.f32 %v1800, 20.0
        %v1947 = vmin.f32 %v1805, 20.0
        %v1948 = vmin.f32 %v1810, 20.0
        %v1949 = vmin.f32 %v1815, 20.0
        %v1950 = vmin.f32 %v1820, 20.0
        %v1951 = vmin.f32 %v1825, 20.0
        %v1952 = vmin.f32 %v1830, 20.0
        %v1953 = vmin.f32 %v1835, 20.0
        %v1954 = vmin.f32 %v1840, 20.0
        %v1955 = vmin.f32 %v1845, 20.0
        %v1956 = vmin.f32 %v1850, 20.0
        %v1957 = vmin.f32 %v1855, 20.0
        %v1958 = vmin.f32 %v1860, 20.0
        %v1959 = vmin.f32 %v1865, 20.0
        %v1960 = vmin.f32 %v1870, 20.0
        %v1961 = vmin.f32 %v1875, 20.0
        %v1962 = vmin.f32 %v1880, 20.0
        %v1963 = vmin.f32 %v1885, 20.0
        %v1964 = vmin.f32 %v1890, 20.0
        %v1965 = vmin.f32 %v1895, 20.0
        %v1966 = vmin.f32 %v1900, 20.0
        %v1967 = vmin.f32 %v1905, 20.0
        %v1968 = vmin.f32 %v1910, 20.0
        %v1969 = vmin.f32 %v1915, 20.0
        %v1970 = vmin.f32 %v1920, 20.0
        %v1971 = vmin.f32 %v1925, 20.0
        %v1972 = vmin.f32 %v1930, 20.0
        %v1973 = vmin.f32 %v1935, 20.0
        %v1974 = vmin.f32 %v1940, 20.0
        %v1975 = vmul.f32 %v1943, 1.442695
        %v1976 = vpow.pop %v1975
        %v1977 = vmul.f32 %v1944, 1.442695
        %v1978 = vpow.pop %v1977
        %v1979 = vmul.f32 %v1945, 1.442695
        %v1980 = vpow.pop %v1979
        %v1981 = vmul.f32 %v1946, 1.442695
        %v1982 = vpow.pop %v1981
        %v1983 = vmul.f32 %v1947, 1.442695
        %v1984 = vpow.pop %v1983
        %v1985 = vmul.f32 %v1948, 1.442695
        %v1986 = vpow.pop %v1985
        %v1987 = vmul.f32 %v1949, 1.442695
        %v1988 = vpow.pop %v1987
        %v1989 = vmul.f32 %v1950, 1.442695
        %v1990 = vpow.pop %v1989
        %v1991 = vmul.f32 %v1951, 1.442695
        %v1992 = vpow.pop %v1991
        %v1993 = vmul.f32 %v1952, 1.442695
        %v1994 = vpow.pop %v1993
        %v1995 = vmul.f32 %v1953, 1.442695
        %v1996 = vpow.pop %v1995
        %v1997 = vmul.f32 %v1954, 1.442695
        %v1998 = vpow.pop %v1997
        %v1999 = vmul.f32 %v1955, 1.442695
        %v2000 = vpow.pop %v1999
        %v2001 = vmul.f32 %v1956, 1.442695
        %v2002 = vpow.pop %v2001
        %v2003 = vmul.f32 %v1957, 1.442695
        %v2004 = vpow.pop %v2003
        %v2005 = vmul.f32 %v1958, 1.442695
        %v2006 = vpow.pop %v2005
        %v2007 = vmul.f32 %v1959, 1.442695
        %v2008 = vpow.pop %v2007
        %v2009 = vmul.f32 %v1960, 1.442695
        %v2010 = vpow.pop %v2009
        %v2011 = vmul.f32 %v1961, 1.442695
        %v2012 = vpow.pop %v2011
        %v2013 = vmul.f32 %v1962, 1.442695
        %v2014 = vpow.pop %v2013
        %v2015 = vmul.f32 %v1963, 1.442695
        %v2016 = vpow.pop %v2015
        %v2017 = vmul.f32 %v1964, 1.442695
        %v2018 = vpow.pop %v2017
        %v2019 = vmul.f32 %v1965, 1.442695
        %v2020 = vpow.pop %v2019
        %v2021 = vmul.f32 %v1966, 1.442695
        %v2022 = vpow.pop %v2021
        %v2023 = vmul.f32 %v1967, 1.442695
        %v2024 = vpow.pop %v2023
        %v2025 = vmul.f32 %v1968, 1.442695
        %v2026 = vpow.pop %v2025
        %v2027 = vmul.f32 %v1969, 1.442695
        %v2028 = vpow.pop %v2027
        %v2029 = vmul.f32 %v1970, 1.442695
        %v2030 = vpow.pop %v2029
        %v2031 = vmul.f32 %v1971, 1.442695
        %v2032 = vpow.pop %v2031
        %v2033 = vmul.f32 %v1972, 1.442695
        %v2034 = vpow.pop %v2033
        %v2035 = vmul.f32 %v1973, 1.442695
        %v2036 = vpow.pop %v2035
        %v2037 = vmul.f32 %v1974, 1.442695
        %v2038 = vpow.pop %v2037
        %v2039 = vadd.f32 %v1976, 2.0
        %v2040 = vadd.f32 %v1978, 2.0
        %v2041 = vadd.f32 %v1980, 2.0
        %v2042 = vadd.f32 %v1982, 2.0
        %v2043 = vadd.f32 %v1984, 2.0
        %v2044 = vadd.f32 %v1986, 2.0
        %v2045 = vadd.f32 %v1988, 2.0
        %v2046 = vadd.f32 %v1990, 2.0
        %v2047 = vadd.f32 %v1992, 2.0
        %v2048 = vadd.f32 %v1994, 2.0
        %v2049 = vadd.f32 %v1996, 2.0
        %v2050 = vadd.f32 %v1998, 2.0
        %v2051 = vadd.f32 %v2000, 2.0
        %v2052 = vadd.f32 %v2002, 2.0
        %v2053 = vadd.f32 %v2004, 2.0
        %v2054 = vadd.f32 %v2006, 2.0
        %v2055 = vadd.f32 %v2008, 2.0
        %v2056 = vadd.f32 %v2010, 2.0
        %v2057 = vadd.f32 %v2012, 2.0
        %v2058 = vadd.f32 %v2014, 2.0
        %v2059 = vadd.f32 %v2016, 2.0
        %v2060 = vadd.f32 %v2018, 2.0
        %v2061 = vadd.f32 %v2020, 2.0
        %v2062 = vadd.f32 %v2022, 2.0
        %v2063 = vadd.f32 %v2024, 2.0
        %v2064 = vadd.f32 %v2026, 2.0
        %v2065 = vadd.f32 %v2028, 2.0
        %v2066 = vadd.f32 %v2030, 2.0
        %v2067 = vadd.f32 %v2032, 2.0
        %v2068 = vadd.f32 %v2034, 2.0
        %v2069 = vadd.f32 %v2036, 2.0
        %v2070 = vadd.f32 %v2038, 2.0
        %v2071 = vmul.f32 %v1976, %v2039
        %v2072 = vmul.f32 %v1978, %v2040
        %v2073 = vmul.f32 %v1980, %v2041
        %v2074 = vmul.f32 %v1982, %v2042
        %v2075 = vmul.f32 %v1984, %v2043
        %v2076 = vmul.f32 %v1986, %v2044
        %v2077 = vmul.f32 %v1988, %v2045
        %v2078 = vmul.f32 %v1990, %v2046
        %v2079 = vmul.f32 %v1992, %v2047
        %v2080 = vmul.f32 %v1994, %v2048
        %v2081 = vmul.f32 %v1996, %v2049
        %v2082 = vmul.f32 %v1998, %v2050
        %v2083 = vmul.f32 %v2000, %v2051
        %v2084 = vmul.f32 %v2002, %v2052
        %v2085 = vmul.f32 %v2004, %v2053
        %v2086 = vmul.f32 %v2006, %v2054
        %v2087 = vmul.f32 %v2008, %v2055
        %v2088 = vmul.f32 %v2010, %v2056
        %v2089 = vmul.f32 %v2012, %v2057
        %v2090 = vmul.f32 %v2014, %v2058
        %v2091 = vmul.f32 %v2016, %v2059
        %v2092 = vmul.f32 %v2018, %v2060
        %v2093 = vmul.f32 %v2020, %v2061
        %v2094 = vmul.f32 %v2022, %v2062
        %v2095 = vmul.f32 %v2024, %v2063
        %v2096 = vmul.f32 %v2026, %v2064
        %v2097 = vmul.f32 %v2028, %v2065
        %v2098 = vmul.f32 %v2030, %v2066
        %v2099 = vmul.f32 %v2032, %v2067
        %v2100 = vmul.f32 %v2034, %v2068
        %v2101 = vmul.f32 %v2036, %v2069
        %v2102 = vmul.f32 %v2038, %v2070
        %v2103 = vadd.f32 %v2071, 2.0
        %v2104 = vadd.f32 %v2072, 2.0
        %v2105 = vadd.f32 %v2073, 2.0
        %v2106 = vadd.f32 %v2074, 2.0
        %v2107 = vadd.f32 %v2075, 2.0
        %v2108 = vadd.f32 %v2076, 2.0
        %v2109 = vadd.f32 %v2077, 2.0
        %v2110 = vadd.f32 %v2078, 2.0
        %v2111 = vadd.f32 %v2079, 2.0
        %v2112 = vadd.f32 %v2080, 2.0
        %v2113 = vadd.f32 %v2081, 2.0
        %v2114 = vadd.f32 %v2082, 2.0
        %v2115 = vadd.f32 %v2083, 2.0
        %v2116 = vadd.f32 %v2084, 2.0
        %v2117 = vadd.f32 %v2085, 2.0
        %v2118 = vadd.f32 %v2086, 2.0
        %v2119 = vadd.f32 %v2087, 2.0
        %v2120 = vadd.f32 %v2088, 2.0
        %v2121 = vadd.f32 %v2089, 2.0
        %v2122 = vadd.f32 %v2090, 2.0
        %v2123 = vadd.f32 %v2091, 2.0
        %v2124 = vadd.f32 %v2092, 2.0
        %v2125 = vadd.f32 %v2093, 2.0
        %v2126 = vadd.f32 %v2094, 2.0
        %v2127 = vadd.f32 %v2095, 2.0
        %v2128 = vadd.f32 %v2096, 2.0
        %v2129 = vadd.f32 %v2097, 2.0
        %v2130 = vadd.f32 %v2098, 2.0
        %v2131 = vadd.f32 %v2099, 2.0
        %v2132 = vadd.f32 %v2100, 2.0
        %v2133 = vadd.f32 %v2101, 2.0
        %v2134 = vadd.f32 %v2102, 2.0
        %v2135 = vrcp.pop %v2103
        %v2136 = vrcp.pop %v2104
        %v2137 = vrcp.pop %v2105
        %v2138 = vrcp.pop %v2106
        %v2139 = vrcp.pop %v2107
        %v2140 = vrcp.pop %v2108
        %v2141 = vrcp.pop %v2109
        %v2142 = vrcp.pop %v2110
        %v2143 = vrcp.pop %v2111
        %v2144 = vrcp.pop %v2112
        %v2145 = vrcp.pop %v2113
        %v2146 = vrcp.pop %v2114
        %v2147 = vrcp.pop %v2115
        %v2148 = vrcp.pop %v2116
        %v2149 = vrcp.pop %v2117
        %v2150 = vrcp.pop %v2118
        %v2151 = vrcp.pop %v2119
        %v2152 = vrcp.pop %v2120
        %v2153 = vrcp.pop %v2121
        %v2154 = vrcp.pop %v2122
        %v2155 = vrcp.pop %v2123
        %v2156 = vrcp.pop %v2124
        %v2157 = vrcp.pop %v2125
        %v2158 = vrcp.pop %v2126
        %v2159 = vrcp.pop %v2127
        %v2160 = vrcp.pop %v2128
        %v2161 = vrcp.pop %v2129
        %v2162 = vrcp.pop %v2130
        %v2163 = vrcp.pop %v2131
        %v2164 = vrcp.pop %v2132
        %v2165 = vrcp.pop %v2133
        %v2166 = vrcp.pop %v2134
        %v2167 = vmul.f32 %v2071, %v2135
        %v2168 = vmul.f32 %v2072, %v2136
        %v2169 = vmul.f32 %v2073, %v2137
        %v2170 = vmul.f32 %v2074, %v2138
        %v2171 = vmul.f32 %v2075, %v2139
        %v2172 = vmul.f32 %v2076, %v2140
        %v2173 = vmul.f32 %v2077, %v2141
        %v2174 = vmul.f32 %v2078, %v2142
        %v2175 = vmul.f32 %v2079, %v2143
        %v2176 = vmul.f32 %v2080, %v2144
        %v2177 = vmul.f32 %v2081, %v2145
        %v2178 = vmul.f32 %v2082, %v2146
        %v2179 = vmul.f32 %v2083, %v2147
        %v2180 = vmul.f32 %v2084, %v2148
        %v2181 = vmul.f32 %v2085, %v2149
        %v2182 = vmul.f32 %v2086, %v2150
        %v2183 = vmul.f32 %v2087, %v2151
        %v2184 = vmul.f32 %v2088, %v2152
        %v2185 = vmul.f32 %v2089, %v2153
        %v2186 = vmul.f32 %v2090, %v2154
        %v2187 = vmul.f32 %v2091, %v2155
        %v2188 = vmul.f32 %v2092, %v2156
        %v2189 = vmul.f32 %v2093, %v2157
        %v2190 = vmul.f32 %v2094, %v2158
        %v2191 = vmul.f32 %v2095, %v2159
        %v2192 = vmul.f32 %v2096, %v2160
        %v2193 = vmul.f32 %v2097, %v2161
        %v2194 = vmul.f32 %v2098, %v2162
        %v2195 = vmul.f32 %v2099, %v2163
        %v2196 = vmul.f32 %v2100, %v2164
        %v2197 = vmul.f32 %v2101, %v2165
        %v2198 = vmul.f32 %v2102, %v2166
        %vm2199 = vcmp.gt.f32.partialorder %v1785, 20.0
        %vm2200 = vcmp.gt.f32.partialorder %v1790, 20.0
        %vm2201 = vcmp.gt.f32.partialorder %v1795, 20.0
        %vm2202 = vcmp.gt.f32.partialorder %v1800, 20.0
        %vm2203 = vcmp.gt.f32.partialorder %v1805, 20.0
        %vm2204 = vcmp.gt.f32.partialorder %v1810, 20.0
        %vm2205 = vcmp.gt.f32.partialorder %v1815, 20.0
        %vm2206 = vcmp.gt.f32.partialorder %v1820, 20.0
        %vm2207 = vcmp.gt.f32.partialorder %v1825, 20.0
        %vm2208 = vcmp.gt.f32.partialorder %v1830, 20.0
        %vm2209 = vcmp.gt.f32.partialorder %v1835, 20.0
        %vm2210 = vcmp.gt.f32.partialorder %v1840, 20.0
        %vm2211 = vcmp.gt.f32.partialorder %v1845, 20.0
        %vm2212 = vcmp.gt.f32.partialorder %v1850, 20.0
        %vm2213 = vcmp.gt.f32.partialorder %v1855, 20.0
        %vm2214 = vcmp.gt.f32.partialorder %v1860, 20.0
        %vm2215 = vcmp.gt.f32.partialorder %v1865, 20.0
        %vm2216 = vcmp.gt.f32.partialorder %v1870, 20.0
        %vm2217 = vcmp.gt.f32.partialorder %v1875, 20.0
        %vm2218 = vcmp.gt.f32.partialorder %v1880, 20.0
        %vm2219 = vcmp.gt.f32.partialorder %v1885, 20.0
        %vm2220 = vcmp.gt.f32.partialorder %v1890, 20.0
        %vm2221 = vcmp.gt.f32.partialorder %v1895, 20.0
        %vm2222 = vcmp.gt.f32.partialorder %v1900, 20.0
        %vm2223 = vcmp.gt.f32.partialorder %v1905, 20.0
        %vm2224 = vcmp.gt.f32.partialorder %v1910, 20.0
        %vm2225 = vcmp.gt.f32.partialorder %v1915, 20.0
        %vm2226 = vcmp.gt.f32.partialorder %v1920, 20.0
        %vm2227 = vcmp.gt.f32.partialorder %v1925, 20.0
        %vm2228 = vcmp.gt.f32.partialorder %v1930, 20.0
        %vm2229 = vcmp.gt.f32.partialorder %v1935, 20.0
        %vm2230 = vcmp.gt.f32.partialorder %v1940, 20.0
        %v2231 = vsel %vm2199, 1.0, %v2167
        %v2232 = vsel %vm2200, 1.0, %v2168
        %v2233 = vsel %vm2201, 1.0, %v2169
        %v2234 = vsel %vm2202, 1.0, %v2170
        %v2235 = vsel %vm2203, 1.0, %v2171
        %v2236 = vsel %vm2204, 1.0, %v2172
        %v2237 = vsel %vm2205, 1.0, %v2173
        %v2238 = vsel %vm2206, 1.0, %v2174
        %v2239 = vsel %vm2207, 1.0, %v2175
        %v2240 = vsel %vm2208, 1.0, %v2176
        %v2241 = vsel %vm2209, 1.0, %v2177
        %v2242 = vsel %vm2210, 1.0, %v2178
        %v2243 = vsel %vm2211, 1.0, %v2179
        %v2244 = vsel %vm2212, 1.0, %v2180
        %v2245 = vsel %vm2213, 1.0, %v2181
        %v2246 = vsel %vm2214, 1.0, %v2182
        %v2247 = vsel %vm2215, 1.0, %v2183
        %v2248 = vsel %vm2216, 1.0, %v2184
        %v2249 = vsel %vm2217, 1.0, %v2185
        %v2250 = vsel %vm2218, 1.0, %v2186
        %v2251 = vsel %vm2219, 1.0, %v2187
        %v2252 = vsel %vm2220, 1.0, %v2188
        %v2253 = vsel %vm2221, 1.0, %v2189
        %v2254 = vsel %vm2222, 1.0, %v2190
        %v2255 = vsel %vm2223, 1.0, %v2191
        %v2256 = vsel %vm2224, 1.0, %v2192
        %v2257 = vsel %vm2225, 1.0, %v2193
        %v2258 = vsel %vm2226, 1.0, %v2194
        %v2259 = vsel %vm2227, 1.0, %v2195
        %v2260 = vsel %vm2228, 1.0, %v2196
        %v2261 = vsel %vm2229, 1.0, %v2197
        %v2262 = vsel %vm2230, 1.0, %v2198
        %v2263 = vmul.f32 %v1785, %v2231
        %v2264 = vmul.f32 %v1790, %v2232
        %v2265 = vmul.f32 %v1795, %v2233
        %v2266 = vmul.f32 %v1800, %v2234
        %v2267 = vmul.f32 %v1805, %v2235
        %v2268 = vmul.f32 %v1810, %v2236
        %v2269 = vmul.f32 %v1815, %v2237
        %v2270 = vmul.f32 %v1820, %v2238
        %v2271 = vmul.f32 %v1825, %v2239
        %v2272 = vmul.f32 %v1830, %v2240
        %v2273 = vmul.f32 %v1835, %v2241
        %v2274 = vmul.f32 %v1840, %v2242
        %v2275 = vmul.f32 %v1845, %v2243
        %v2276 = vmul.f32 %v1850, %v2244
        %v2277 = vmul.f32 %v1855, %v2245
        %v2278 = vmul.f32 %v1860, %v2246
        %v2279 = vmul.f32 %v1865, %v2247
        %v2280 = vmul.f32 %v1870, %v2248
        %v2281 = vmul.f32 %v1875, %v2249
        %v2282 = vmul.f32 %v1880, %v2250
        %v2283 = vmul.f32 %v1885, %v2251
        %v2284 = vmul.f32 %v1890, %v2252
        %v2285 = vmul.f32 %v1895, %v2253
        %v2286 = vmul.f32 %v1900, %v2254
        %v2287 = vmul.f32 %v1905, %v2255
        %v2288 = vmul.f32 %v1910, %v2256
        %v2289 = vmul.f32 %v1915, %v2257
        %v2290 = vmul.f32 %v1920, %v2258
        %v2291 = vmul.f32 %v1925, %v2259
        %v2292 = vmul.f32 %v1930, %v2260
        %v2293 = vmul.f32 %v1935, %v2261
        %v2294 = vmul.f32 %v1940, %v2262
        %vm2295 = vcmask 261120
        %2296 = vst.msk [vmem:[%s163] sm:$0xff] %vm2295, %v2263
        %2297 = vst.msk [vmem:[%s163 + $0x8] sm:$0xff] %vm2295, %v2264
        %2298 = vst.msk [vmem:[%s163 + $0x10] sm:$0xff] %vm2295, %v2265
        %2299 = vst.msk [vmem:[%s163 + $0x18] sm:$0xff] %vm2295, %v2266
        %2300 = vst.msk [vmem:[%s163 + $0x20] sm:$0xff] %vm2295, %v2267
        %2301 = vst.msk [vmem:[%s163 + $0x28] sm:$0xff] %vm2295, %v2268
        %2302 = vst.msk [vmem:[%s163 + $0x30] sm:$0xff] %vm2295, %v2269
        %2303 = vst.msk [vmem:[%s163 + $0x38] sm:$0xff] %vm2295, %v2270
        %2304 = vst.msk [vmem:[%s163 + $0x40] sm:$0xff] %vm2295, %v2271
        %2305 = vst.msk [vmem:[%s163 + $0x48] sm:$0xff] %vm2295, %v2272
        %2306 = vst.msk [vmem:[%s163 + $0x50] sm:$0xff] %vm2295, %v2273
        %2307 = vst.msk [vmem:[%s163 + $0x58] sm:$0xff] %vm2295, %v2274
        %2308 = vst.msk [vmem:[%s163 + $0x60] sm:$0xff] %vm2295, %v2275
        %2309 = vst.msk [vmem:[%s163 + $0x68] sm:$0xff] %vm2295, %v2276
        %2310 = vst.msk [vmem:[%s163 + $0x70] sm:$0xff] %vm2295, %v2277
        %2311 = vst.msk [vmem:[%s163 + $0x78] sm:$0xff] %vm2295, %v2278
        %2312 = vst.msk [vmem:[%s163 + $0x80] sm:$0xff] %vm2295, %v2279
        %2313 = vst.msk [vmem:[%s163 + $0x88] sm:$0xff] %vm2295, %v2280
        %2314 = vst.msk [vmem:[%s163 + $0x90] sm:$0xff] %vm2295, %v2281
        %2315 = vst.msk [vmem:[%s163 + $0x98] sm:$0xff] %vm2295, %v2282
        %2316 = vst.msk [vmem:[%s163 + $0xa0] sm:$0xff] %vm2295, %v2283
        %2317 = vst.msk [vmem:[%s163 + $0xa8] sm:$0xff] %vm2295, %v2284
        %2318 = vst.msk [vmem:[%s163 + $0xb0] sm:$0xff] %vm2295, %v2285
        %2319 = vst.msk [vmem:[%s163 + $0xb8] sm:$0xff] %vm2295, %v2286
        %2320 = vst.msk [vmem:[%s163 + $0xc0] sm:$0xff] %vm2295, %v2287
        %2321 = vst.msk [vmem:[%s163 + $0xc8] sm:$0xff] %vm2295, %v2288
        %2322 = vst.msk [vmem:[%s163 + $0xd0] sm:$0xff] %vm2295, %v2289
        %2323 = vst.msk [vmem:[%s163 + $0xd8] sm:$0xff] %vm2295, %v2290
        %2324 = vst.msk [vmem:[%s163 + $0xe0] sm:$0xff] %vm2295, %v2291
        %2325 = vst.msk [vmem:[%s163 + $0xe8] sm:$0xff] %vm2295, %v2292
        %2326 = vst.msk [vmem:[%s163 + $0xf0] sm:$0xff] %vm2295, %v2293
        %2327 = vst.msk [vmem:[%s163 + $0xf8] sm:$0xff] %vm2295, %v2294
        %s2328 = sand.u32 %s93, 1
        %s2329 = scalar_lea.sflag [#allocation3], %s2328
        %s2330 = sand.u32 %s93, 1
        %s2331 = smul.addr %s2330, 256
        %s2332 = scalar_lea.vmem [#allocation2], %s2331
        // Predicated region
        $region33: #{tpu_custom_call.1} parent=31 // pred_check
          %p2333 = pneg %p103
        $region34: #{tpu_custom_call.1} parent=31 // pred_check_branch
          %2335 = sbr.rel (%p2333) target = $region36
        $region35: #{tpu_custom_call.1} parent=31 // pred_region
          %s2337 = ssub.s32 4096, 4096
          %2338 = vsyncadd %s2329, %s2337
          %s2339 = smul.addr %s17, 32
          %s2340 = smul.addr %s2339, 128
          %s2341 = scalar_lea.hbm %s3, %s2340
          %s2342 = sshll.u32 %s2332, 4
          %s2343 = int_to_ptr.vmem [resolvable:$true] %s2342
          %2348 = dma.vmem_to_hbm [thread:$0]  %s2343, 4096, %s2341, %s2329, 128, 128, 8
        $region36: #{tpu_custom_call.1} parent=31 // pred_fallthru
          _
      $region32: #{tpu_custom_call.1} parent=5 // pred_fallthru
        _
      %p2349 = scmp.le.s32.totalorder 2, %s12
      // Predicated region
      $region37: #{tpu_custom_call.1} parent=5 // pred_check
        %p2350 = pneg %p2349
      $region38: #{tpu_custom_call.1} parent=5 // pred_check_branch
        %2352 = sbr.rel (%p2350) target = $region40
      $region39: #{tpu_custom_call.1} parent=5 // pred_region
        %s2353 = ssub.s32 %s12, 2
        // Predicated region
        $region41: #{tpu_custom_call.1} parent=39 // pred_check
          %p2354 = pneg %p109
        $region42: #{tpu_custom_call.1} parent=39 // pred_check_branch
          %2356 = sbr.rel (%p2354) target = $region44
        $region43: #{tpu_custom_call.1} parent=39 // pred_region
          %s2357 = sand.u32 %s94, 1
          %s2358 = scalar_lea.sflag [#allocation3], %s2357
          %s2359 = sand.u32 %s94, 1
          %s2360 = smul.addr %s2359, 256
          %s2361 = scalar_lea.vmem [#allocation2], %s2360
          %2362 = dma.done %s2358, 4096
        $region44: #{tpu_custom_call.1} parent=39 // pred_fallthru
          _
      $region40: #{tpu_custom_call.1} parent=5 // pred_fallthru
        _
    $region6: #{tpu_custom_call.1} parent=1 // loop_footer
      %s16 = sadd.s32 1, %s12
    $region7: #{tpu_custom_call.1} parent=1 // loop_footer_branch
      %11 = sbr.rel target = $region3
    $region8: #{tpu_custom_call.1} parent=1 // loop_exit
      _
    %2363 = vsyncpa [#allocation3], 1
    %s2364 = scalar_lea.sflag [#allocation3], 1
    %2365 = vsyncpa %s2364, 1

</llo_original>
